<compile_context>
chip_gen: v6e
topology: v6e:2x2x1
jax: 0.10.0
libtpu: 0.0.40
codegen_flags: <defaults>
</compile_context>

<pallas_src>
import math

import jax
import jax.numpy as jnp
from jax.experimental import pallas as pl
from jax.experimental.pallas import tpu as pltpu


def _make_lstm_kernel(t_blk: int, hidden_dim: int):
    """Build an LSTM kernel that runs `t_blk` time steps per grid iteration."""

    def kernel(x_ref, h0_ref, c0_ref, u_ref, v_ref, b_ref,
               hseq_ref, cT_ref, h_sc, c_sc):
        tb = pl.program_id(0)

        # Initialize the recurrent state (lives in VMEM scratch, persists
        # across the sequential grid) from h0/c0 on the first block only.
        @pl.when(tb == 0)
        def _():
            h_sc[...] = h0_ref[...]
            c_sc[...] = c0_ref[...]

        h = h_sc[...]                       # (B, H) f32
        c = c_sc[...]                       # (B, H) f32
        u = u_ref[...]                      # (D, 4H) bf16, resident weights
        v = v_ref[...]                      # (H, 4H) bf16, resident weights
        b = b_ref[...]                      # (1, 4H) f32 fused bias
        H = hidden_dim

        # Statically unrolled inner loop over the time block (t_blk is small).
        for s in range(t_blk):
            x_t = x_ref[:, s, :].astype(jnp.bfloat16)         # (B, D) bf16
            # Fused gate pre-activation: (B, 4H), f32 accumulation on MXU.
            z = (jnp.dot(x_t, u, preferred_element_type=jnp.float32)
                 + jnp.dot(h.astype(jnp.bfloat16), v,
                           preferred_element_type=jnp.float32)
                 + b)
            # Gate order [i | f | o | g] along the lane axis (static slices).
            i_t = jax.nn.sigmoid(z[:, 0 * H:1 * H])
            f_t = jax.nn.sigmoid(z[:, 1 * H:2 * H])
            o_t = jax.nn.sigmoid(z[:, 2 * H:3 * H])
            g_t = jnp.tanh(z[:, 3 * H:4 * H])
            c = f_t * c + i_t * g_t
            h = o_t * jnp.tanh(c)
            hseq_ref[s] = h.astype(hseq_ref.dtype)

        # Carry the state to the next block; c_T output tile is resident
        # (constant index map) so the last write is what lands in HBM.
        h_sc[...] = h
        c_sc[...] = c
        cT_ref[...] = c.astype(cT_ref.dtype)

    return kernel


def naive_lstm_forward(x_btd, params, cur_state=None, t_blk=None):
    """x_btd: (B, T, D_in) float32 (batch-major, like the PyTorch module).

    Returns (hidden_seq (T, B, H), (h_T, c_T)).
    """
    U, V, b = params["U"], params["V"], params["b"]   # (4,D,H), (4,H,H), (4,1,H)
    B, T, D = x_btd.shape
    H = U.shape[-1]

    if cur_state is None:
        h0 = jnp.zeros((B, H), jnp.float32)
        c0 = jnp.zeros((B, H), jnp.float32)
    else:
        h0, c0 = cur_state
        h0 = h0.astype(jnp.float32)
        c0 = c0.astype(jnp.float32)

    # Fused gate weights, gate order [i | f | o | g] along the last (lane) axis.
    # Weights go to bf16 for the MXU (f32 accumulation in-kernel); the bias is
    # added post-matmul in f32.
    u_cat = jnp.transpose(U, (1, 0, 2)).reshape(D, 4 * H).astype(jnp.bfloat16)
    v_cat = jnp.transpose(V, (1, 0, 2)).reshape(H, 4 * H).astype(jnp.bfloat16)
    b_cat = b.reshape(1, 4 * H).astype(jnp.float32)

    # Time-block size: a multiple of 8 keeps the (B, T_BLK, D) block's
    # second-to-last dim sublane-aligned; fall back to the whole sequence.
    if t_blk is None or T % t_blk != 0 or (t_blk % 8 != 0 and t_blk != T):
        t_blk = next((c for c in (32, 16, 8) if T % c == 0), T)
    n_blk = T // t_blk

    kernel = _make_lstm_kernel(t_blk, H)

    grid_spec = pltpu.PrefetchScalarGridSpec(
        num_scalar_prefetch=0,
        grid=(n_blk,),
        in_specs=[
            pl.BlockSpec((B, t_blk, D), lambda t: (0, t, 0)),   # x block (no transpose)
            pl.BlockSpec((B, H), lambda t: (0, 0)),             # h0 (read at t==0)
            pl.BlockSpec((B, H), lambda t: (0, 0)),             # c0 (read at t==0)
            pl.BlockSpec((D, 4 * H), lambda t: (0, 0)),         # U_cat (resident)
            pl.BlockSpec((H, 4 * H), lambda t: (0, 0)),         # V_cat (resident)
            pl.BlockSpec((1, 4 * H), lambda t: (0, 0)),         # b_cat (resident)
        ],
        out_specs=[
            pl.BlockSpec((t_blk, B, H), lambda t: (t, 0, 0)),   # hidden_seq block
            pl.BlockSpec((B, H), lambda t: (0, 0)),             # c_T (resident)
        ],
        scratch_shapes=[
            pltpu.VMEM((B, H), jnp.float32),                    # h state
            pltpu.VMEM((B, H), jnp.float32),                    # c state
        ],
    )

    hseq, cT = pl.pallas_call(
        kernel,
        grid_spec=grid_spec,
        out_shape=(
            jax.ShapeDtypeStruct((T, B, H), jnp.float32),
            jax.ShapeDtypeStruct((B, H), jnp.float32),
        ),
        compiler_params=pltpu.CompilerParams(
            dimension_semantics=("arbitrary",),        # sequential recurrence
            vmem_limit_bytes=48 * 1024 * 1024,
        ),
    )(x_btd, h0, c0, u_cat, v_cat, b_cat)

    hT = hseq[-1]
    # TODO(synk): for multi-TC chips (v7x) a leading "parallel" batch-shard
    # grid axis would exploit both TensorCores; skipped at B=2.
    return hseq, (hT, cT)


def init_params(key, input_dim, hidden_dim):
    """Matches the PyTorch init: uniform(-stdv, stdv), stdv = 1/sqrt(hidden_dim)."""
    stdv = 1.0 / math.sqrt(hidden_dim)
    ks = jax.random.split(key, 3)
    U = jax.random.uniform(ks[0], (4, input_dim, hidden_dim),
                           jnp.float32, -stdv, stdv)
    V = jax.random.uniform(ks[1], (4, hidden_dim, hidden_dim),
                           jnp.float32, -stdv, stdv)
    b = jax.random.uniform(ks[2], (4, 1, hidden_dim),
                           jnp.float32, -stdv, stdv)
    return {"U": U, "V": V, "b": b}


def reference_lstm(x_btd, params):
    """Pure-JAX f32 reference replicating the PyTorch loop (gate order i,f,o,g)."""
    U, V, b = params["U"], params["V"], params["b"]
    B, T, D = x_btd.shape
    H = U.shape[-1]
    h = jnp.zeros((B, H), jnp.float32)
    c = jnp.zeros((B, H), jnp.float32)

    def step(carry, x_t):
        h, c = carry
        i_t = jax.nn.sigmoid(x_t @ U[0] + h @ V[0] + b[0])
        f_t = jax.nn.sigmoid(x_t @ U[1] + h @ V[1] + b[1])
        o_t = jax.nn.sigmoid(x_t @ U[2] + h @ V[2] + b[2])
        g_t = jnp.tanh(x_t @ U[3] + h @ V[3] + b[3])
        c = f_t * c + i_t * g_t
        h = o_t * jnp.tanh(c)
        return (h, c), h

    (hT, cT), hseq = jax.lax.scan(step, (h, c), jnp.transpose(x_btd, (1, 0, 2)))
    return hseq, (hT, cT)


if __name__ == "__main__":
    B, T, D_IN, H = 2, 16, 16, 32

    key = jax.random.PRNGKey(0)
    k_param, k_x = jax.random.split(key)
    params = init_params(k_param, D_IN, H)
    x = jax.random.normal(k_x, (B, T, D_IN), jnp.float32)

    # t_blk=8 -> grid=(2,), exercising the scratch-carried state across blocks.
    hseq, (hT, cT) = naive_lstm_forward(x, params, cur_state=None, t_blk=8)
    jax.block_until_ready((hseq, hT, cT))

    hseq_ref, (hT_ref, cT_ref) = reference_lstm(x, params)
    # Tolerance loosened vs. the pure-f32 reference because the kernel uses
    # bf16 MXU operands (f32 accumulation and f32 state).
    assert jnp.allclose(hseq, hseq_ref, atol=3e-2, rtol=3e-2)
    assert jnp.allclose(hT, hT_ref, atol=3e-2, rtol=3e-2)
    assert jnp.allclose(cT, cT_ref, atol=3e-2, rtol=3e-2)

    print("KERNEL_OK")
</pallas_src>

<mosaic_0001>
module attributes {stable_mosaic.version = 11 : i64} {
  func.func @kernel(%arg0: i32, %arg1: memref<2x8x16xf32, #tpu.memory_space<vmem>>, %arg2: memref<2x32xf32, #tpu.memory_space<vmem>>, %arg3: memref<2x32xf32, #tpu.memory_space<vmem>>, %arg4: memref<16x128xbf16, #tpu.memory_space<vmem>>, %arg5: memref<32x128xbf16, #tpu.memory_space<vmem>>, %arg6: memref<1x128xf32, #tpu.memory_space<vmem>>, %arg7: memref<8x2x32xf32, #tpu.memory_space<vmem>>, %arg8: memref<2x32xf32, #tpu.memory_space<vmem>>, %arg9: memref<2x32xf32, #tpu.memory_space<vmem>>, %arg10: memref<2x32xf32, #tpu.memory_space<vmem>>) attributes {dimension_semantics = [#tpu.dimension_semantics<arbitrary>], iteration_bounds = array<i64: 2>, scalar_prefetch = 0 : i64, scratch_operands = 2 : i64, tpu.core_type = #tpu.core_type<tc>, window_params = [{transform_indices = @transform_0, window_bounds = array<i64: 2, 8, 16>}, {pipeline_mode = #tpu.pipeline_mode<synchronous>, transform_indices = @transform_1, window_bounds = array<i64: 2, 32>}, {pipeline_mode = #tpu.pipeline_mode<synchronous>, transform_indices = @transform_2, window_bounds = array<i64: 2, 32>}, {pipeline_mode = #tpu.pipeline_mode<synchronous>, transform_indices = @transform_3, window_bounds = array<i64: 16, 128>}, {pipeline_mode = #tpu.pipeline_mode<synchronous>, transform_indices = @transform_4, window_bounds = array<i64: 32, 128>}, {pipeline_mode = #tpu.pipeline_mode<synchronous>, transform_indices = @transform_5, window_bounds = array<i64: 1, 128>}, {transform_indices = @transform_6, window_bounds = array<i64: 8, 2, 32>}, {pipeline_mode = #tpu.pipeline_mode<synchronous>, transform_indices = @transform_7, window_bounds = array<i64: 2, 32>}]} {
    %c0_i32 = arith.constant 0 : i32
    %0 = arith.cmpi eq, %arg0, %c0_i32 : i32
    %1 = arith.extui %0 : i1 to i32
    %c0_i32_0 = arith.constant 0 : i32
    %2 = arith.cmpi ne, %1, %c0_i32_0 : i32
    scf.if %2 {
      %c0_96 = arith.constant 0 : index
      %c0_97 = arith.constant 0 : index
      %307 = vector.load %arg2[%c0_96, %c0_97] : memref<2x32xf32, #tpu.memory_space<vmem>>, vector<2x32xf32>
      %c0_98 = arith.constant 0 : index
      %c0_99 = arith.constant 0 : index
      %308 = vector.load %arg9[%c0_98, %c0_99] : memref<2x32xf32, #tpu.memory_space<vmem>>, vector<2x32xf32>
      tpu.vector_store %arg9[%c0_98, %c0_99], %307 {strides = array<i32>} : memref<2x32xf32, #tpu.memory_space<vmem>>, vector<2x32xf32>,
      %c0_100 = arith.constant 0 : index
      %c0_101 = arith.constant 0 : index
      %309 = vector.load %arg3[%c0_100, %c0_101] : memref<2x32xf32, #tpu.memory_space<vmem>>, vector<2x32xf32>
      %c0_102 = arith.constant 0 : index
      %c0_103 = arith.constant 0 : index
      %310 = vector.load %arg10[%c0_102, %c0_103] : memref<2x32xf32, #tpu.memory_space<vmem>>, vector<2x32xf32>
      tpu.vector_store %arg10[%c0_102, %c0_103], %309 {strides = array<i32>} : memref<2x32xf32, #tpu.memory_space<vmem>>, vector<2x32xf32>,
    } else {
    }
    %c0 = arith.constant 0 : index
    %c0_1 = arith.constant 0 : index
    %3 = vector.load %arg9[%c0, %c0_1] : memref<2x32xf32, #tpu.memory_space<vmem>>, vector<2x32xf32>
    %c0_2 = arith.constant 0 : index
    %c0_3 = arith.constant 0 : index
    %4 = vector.load %arg10[%c0_2, %c0_3] : memref<2x32xf32, #tpu.memory_space<vmem>>, vector<2x32xf32>
    %c0_4 = arith.constant 0 : index
    %c0_5 = arith.constant 0 : index
    %5 = vector.load %arg4[%c0_4, %c0_5] : memref<16x128xbf16, #tpu.memory_space<vmem>>, vector<16x128xbf16>
    %c0_6 = arith.constant 0 : index
    %c0_7 = arith.constant 0 : index
    %6 = vector.load %arg5[%c0_6, %c0_7] : memref<32x128xbf16, #tpu.memory_space<vmem>>, vector<32x128xbf16>
    %c0_8 = arith.constant 0 : index
    %c0_9 = arith.constant 0 : index
    %7 = vector.load %arg6[%c0_8, %c0_9] : memref<1x128xf32, #tpu.memory_space<vmem>>, vector<1x128xf32>
    %c0_10 = arith.constant 0 : index
    %c0_11 = arith.constant 0 : index
    %c0_12 = arith.constant 0 : index
    %8 = vector.load %arg1[%c0_10, %c0_11, %c0_12] : memref<2x8x16xf32, #tpu.memory_space<vmem>>, vector<2x1x16xf32>
    %9 = vector.shape_cast %8 : vector<2x1x16xf32> to vector<2x16xf32>
    %10 = arith.truncf %9 : vector<2x16xf32> to vector<2x16xbf16>
    %cst = arith.constant dense<0.000000e+00> : vector<2x128xf32>
    %11 = tpu.matmul %10, %5, %cst {dimension_numbers = #tpu.dot_dimension_numbers<[1], [0], [0], [1], [0, 0, 1, 1], [], []>} : vector<2x16xbf16>, vector<16x128xbf16>, vector<2x128xf32> -> vector<2x128xf32>
    %12 = arith.truncf %3 : vector<2x32xf32> to vector<2x32xbf16>
    %cst_13 = arith.constant dense<0.000000e+00> : vector<2x128xf32>
    %13 = tpu.matmul %12, %6, %cst_13 {dimension_numbers = #tpu.dot_dimension_numbers<[1], [0], [0], [1], [0, 0, 1, 1], [], []>} : vector<2x32xbf16>, vector<32x128xbf16>, vector<2x128xf32> -> vector<2x128xf32>
    %14 = arith.addf %11, %13 : vector<2x128xf32>
    %15 = vector.broadcast %7 : vector<1x128xf32> to vector<2x128xf32>
    %16 = arith.addf %14, %15 : vector<2x128xf32>
    %17 = vector.extract_strided_slice %16 {offsets = [0, 0], sizes = [2, 32], strides = [1, 1]} : vector<2x128xf32> to vector<2x32xf32>
    %18 = arith.negf %17 : vector<2x32xf32>
    %19 = math.exp %18 : vector<2x32xf32>
    %cst_14 = arith.constant 1.000000e+00 : f32
    %20 = vector.broadcast %cst_14 : f32 to vector<2x32xf32>
    %21 = arith.addf %20, %19 : vector<2x32xf32>
    %22 = arith.divf %20, %21 : vector<2x32xf32>
    %23 = vector.extract_strided_slice %16 {offsets = [0, 32], sizes = [2, 32], strides = [1, 1]} : vector<2x128xf32> to vector<2x32xf32>
    %24 = arith.negf %23 : vector<2x32xf32>
    %25 = math.exp %24 : vector<2x32xf32>
    %cst_15 = arith.constant 1.000000e+00 : f32
    %26 = vector.broadcast %cst_15 : f32 to vector<2x32xf32>
    %27 = arith.addf %26, %25 : vector<2x32xf32>
    %28 = arith.divf %26, %27 : vector<2x32xf32>
    %29 = vector.extract_strided_slice %16 {offsets = [0, 64], sizes = [2, 32], strides = [1, 1]} : vector<2x128xf32> to vector<2x32xf32>
    %30 = arith.negf %29 : vector<2x32xf32>
    %31 = math.exp %30 : vector<2x32xf32>
    %cst_16 = arith.constant 1.000000e+00 : f32
    %32 = vector.broadcast %cst_16 : f32 to vector<2x32xf32>
    %33 = arith.addf %32, %31 : vector<2x32xf32>
    %34 = arith.divf %32, %33 : vector<2x32xf32>
    %35 = vector.extract_strided_slice %16 {offsets = [0, 96], sizes = [2, 32], strides = [1, 1]} : vector<2x128xf32> to vector<2x32xf32>
    %36 = math.tanh %35 : vector<2x32xf32>
    %37 = arith.mulf %28, %4 : vector<2x32xf32>
    %38 = arith.mulf %22, %36 : vector<2x32xf32>
    %39 = arith.addf %37, %38 : vector<2x32xf32>
    %40 = math.tanh %39 : vector<2x32xf32>
    %41 = arith.mulf %34, %40 : vector<2x32xf32>
    %c0_17 = arith.constant 0 : index
    %c0_18 = arith.constant 0 : index
    %c0_19 = arith.constant 0 : index
    %42 = vector.load %arg7[%c0_17, %c0_18, %c0_19] : memref<8x2x32xf32, #tpu.memory_space<vmem>>, vector<1x2x32xf32>
    %43 = vector.shape_cast %42 : vector<1x2x32xf32> to vector<2x32xf32>
    %44 = vector.shape_cast %41 : vector<2x32xf32> to vector<1x2x32xf32>
    tpu.vector_store %arg7[%c0_17, %c0_18, %c0_19], %44 {strides = array<i32>} : memref<8x2x32xf32, #tpu.memory_space<vmem>>, vector<1x2x32xf32>,
    %c0_20 = arith.constant 0 : index
    %c1 = arith.constant 1 : index
    %c0_21 = arith.constant 0 : index
    %45 = vector.load %arg1[%c0_20, %c1, %c0_21] : memref<2x8x16xf32, #tpu.memory_space<vmem>>, vector<2x1x16xf32>
    %46 = vector.shape_cast %45 : vector<2x1x16xf32> to vector<2x16xf32>
    %47 = arith.truncf %46 : vector<2x16xf32> to vector<2x16xbf16>
    %cst_22 = arith.constant dense<0.000000e+00> : vector<2x128xf32>
    %48 = tpu.matmul %47, %5, %cst_22 {dimension_numbers = #tpu.dot_dimension_numbers<[1], [0], [0], [1], [0, 0, 1, 1], [], []>} : vector<2x16xbf16>, vector<16x128xbf16>, vector<2x128xf32> -> vector<2x128xf32>
    %49 = arith.truncf %41 : vector<2x32xf32> to vector<2x32xbf16>
    %cst_23 = arith.constant dense<0.000000e+00> : vector<2x128xf32>
    %50 = tpu.matmul %49, %6, %cst_23 {dimension_numbers = #tpu.dot_dimension_numbers<[1], [0], [0], [1], [0, 0, 1, 1], [], []>} : vector<2x32xbf16>, vector<32x128xbf16>, vector<2x128xf32> -> vector<2x128xf32>
    %51 = arith.addf %48, %50 : vector<2x128xf32>
    %52 = vector.broadcast %7 : vector<1x128xf32> to vector<2x128xf32>
    %53 = arith.addf %51, %52 : vector<2x128xf32>
    %54 = vector.extract_strided_slice %53 {offsets = [0, 0], sizes = [2, 32], strides = [1, 1]} : vector<2x128xf32> to vector<2x32xf32>
    %55 = arith.negf %54 : vector<2x32xf32>
    %56 = math.exp %55 : vector<2x32xf32>
    %cst_24 = arith.constant 1.000000e+00 : f32
    %57 = vector.broadcast %cst_24 : f32 to vector<2x32xf32>
    %58 = arith.addf %57, %56 : vector<2x32xf32>
    %59 = arith.divf %57, %58 : vector<2x32xf32>
    %60 = vector.extract_strided_slice %53 {offsets = [0, 32], sizes = [2, 32], strides = [1, 1]} : vector<2x128xf32> to vector<2x32xf32>
    %61 = arith.negf %60 : vector<2x32xf32>
    %62 = math.exp %61 : vector<2x32xf32>
    %cst_25 = arith.constant 1.000000e+00 : f32
    %63 = vector.broadcast %cst_25 : f32 to vector<2x32xf32>
    %64 = arith.addf %63, %62 : vector<2x32xf32>
    %65 = arith.divf %63, %64 : vector<2x32xf32>
    %66 = vector.extract_strided_slice %53 {offsets = [0, 64], sizes = [2, 32], strides = [1, 1]} : vector<2x128xf32> to vector<2x32xf32>
    %67 = arith.negf %66 : vector<2x32xf32>
    %68 = math.exp %67 : vector<2x32xf32>
    %cst_26 = arith.constant 1.000000e+00 : f32
    %69 = vector.broadcast %cst_26 : f32 to vector<2x32xf32>
    %70 = arith.addf %69, %68 : vector<2x32xf32>
    %71 = arith.divf %69, %70 : vector<2x32xf32>
    %72 = vector.extract_strided_slice %53 {offsets = [0, 96], sizes = [2, 32], strides = [1, 1]} : vector<2x128xf32> to vector<2x32xf32>
    %73 = math.tanh %72 : vector<2x32xf32>
    %74 = arith.mulf %65, %39 : vector<2x32xf32>
    %75 = arith.mulf %59, %73 : vector<2x32xf32>
    %76 = arith.addf %74, %75 : vector<2x32xf32>
    %77 = math.tanh %76 : vector<2x32xf32>
    %78 = arith.mulf %71, %77 : vector<2x32xf32>
    %c1_27 = arith.constant 1 : index
    %c0_28 = arith.constant 0 : index
    %c0_29 = arith.constant 0 : index
    %79 = vector.load %arg7[%c1_27, %c0_28, %c0_29] : memref<8x2x32xf32, #tpu.memory_space<vmem>>, vector<1x2x32xf32>
    %80 = vector.shape_cast %79 : vector<1x2x32xf32> to vector<2x32xf32>
    %81 = vector.shape_cast %78 : vector<2x32xf32> to vector<1x2x32xf32>
    tpu.vector_store %arg7[%c1_27, %c0_28, %c0_29], %81 {strides = array<i32>} : memref<8x2x32xf32, #tpu.memory_space<vmem>>, vector<1x2x32xf32>,
    %c0_30 = arith.constant 0 : index
    %c2 = arith.constant 2 : index
    %c0_31 = arith.constant 0 : index
    %82 = vector.load %arg1[%c0_30, %c2, %c0_31] : memref<2x8x16xf32, #tpu.memory_space<vmem>>, vector<2x1x16xf32>
    %83 = vector.shape_cast %82 : vector<2x1x16xf32> to vector<2x16xf32>
    %84 = arith.truncf %83 : vector<2x16xf32> to vector<2x16xbf16>
    %cst_32 = arith.constant dense<0.000000e+00> : vector<2x128xf32>
    %85 = tpu.matmul %84, %5, %cst_32 {dimension_numbers = #tpu.dot_dimension_numbers<[1], [0], [0], [1], [0, 0, 1, 1], [], []>} : vector<2x16xbf16>, vector<16x128xbf16>, vector<2x128xf32> -> vector<2x128xf32>
    %86 = arith.truncf %78 : vector<2x32xf32> to vector<2x32xbf16>
    %cst_33 = arith.constant dense<0.000000e+00> : vector<2x128xf32>
    %87 = tpu.matmul %86, %6, %cst_33 {dimension_numbers = #tpu.dot_dimension_numbers<[1], [0], [0], [1], [0, 0, 1, 1], [], []>} : vector<2x32xbf16>, vector<32x128xbf16>, vector<2x128xf32> -> vector<2x128xf32>
    %88 = arith.addf %85, %87 : vector<2x128xf32>
    %89 = vector.broadcast %7 : vector<1x128xf32> to vector<2x128xf32>
    %90 = arith.addf %88, %89 : vector<2x128xf32>
    %91 = vector.extract_strided_slice %90 {offsets = [0, 0], sizes = [2, 32], strides = [1, 1]} : vector<2x128xf32> to vector<2x32xf32>
    %92 = arith.negf %91 : vector<2x32xf32>
    %93 = math.exp %92 : vector<2x32xf32>
    %cst_34 = arith.constant 1.000000e+00 : f32
    %94 = vector.broadcast %cst_34 : f32 to vector<2x32xf32>
    %95 = arith.addf %94, %93 : vector<2x32xf32>
    %96 = arith.divf %94, %95 : vector<2x32xf32>
    %97 = vector.extract_strided_slice %90 {offsets = [0, 32], sizes = [2, 32], strides = [1, 1]} : vector<2x128xf32> to vector<2x32xf32>
    %98 = arith.negf %97 : vector<2x32xf32>
    %99 = math.exp %98 : vector<2x32xf32>
    %cst_35 = arith.constant 1.000000e+00 : f32
    %100 = vector.broadcast %cst_35 : f32 to vector<2x32xf32>
    %101 = arith.addf %100, %99 : vector<2x32xf32>
    %102 = arith.divf %100, %101 : vector<2x32xf32>
    %103 = vector.extract_strided_slice %90 {offsets = [0, 64], sizes = [2, 32], strides = [1, 1]} : vector<2x128xf32> to vector<2x32xf32>
    %104 = arith.negf %103 : vector<2x32xf32>
    %105 = math.exp %104 : vector<2x32xf32>
    %cst_36 = arith.constant 1.000000e+00 : f32
    %106 = vector.broadcast %cst_36 : f32 to vector<2x32xf32>
    %107 = arith.addf %106, %105 : vector<2x32xf32>
    %108 = arith.divf %106, %107 : vector<2x32xf32>
    %109 = vector.extract_strided_slice %90 {offsets = [0, 96], sizes = [2, 32], strides = [1, 1]} : vector<2x128xf32> to vector<2x32xf32>
    %110 = math.tanh %109 : vector<2x32xf32>
    %111 = arith.mulf %102, %76 : vector<2x32xf32>
    %112 = arith.mulf %96, %110 : vector<2x32xf32>
    %113 = arith.addf %111, %112 : vector<2x32xf32>
    %114 = math.tanh %113 : vector<2x32xf32>
    %115 = arith.mulf %108, %114 : vector<2x32xf32>
    %c2_37 = arith.constant 2 : index
    %c0_38 = arith.constant 0 : index
    %c0_39 = arith.constant 0 : index
    %116 = vector.load %arg7[%c2_37, %c0_38, %c0_39] : memref<8x2x32xf32, #tpu.memory_space<vmem>>, vector<1x2x32xf32>
    %117 = vector.shape_cast %116 : vector<1x2x32xf32> to vector<2x32xf32>
    %118 = vector.shape_cast %115 : vector<2x32xf32> to vector<1x2x32xf32>
    tpu.vector_store %arg7[%c2_37, %c0_38, %c0_39], %118 {strides = array<i32>} : memref<8x2x32xf32, #tpu.memory_space<vmem>>, vector<1x2x32xf32>,
    %c0_40 = arith.constant 0 : index
    %c3 = arith.constant 3 : index
    %c0_41 = arith.constant 0 : index
    %119 = vector.load %arg1[%c0_40, %c3, %c0_41] : memref<2x8x16xf32, #tpu.memory_space<vmem>>, vector<2x1x16xf32>
    %120 = vector.shape_cast %119 : vector<2x1x16xf32> to vector<2x16xf32>
    %121 = arith.truncf %120 : vector<2x16xf32> to vector<2x16xbf16>
    %cst_42 = arith.constant dense<0.000000e+00> : vector<2x128xf32>
    %122 = tpu.matmul %121, %5, %cst_42 {dimension_numbers = #tpu.dot_dimension_numbers<[1], [0], [0], [1], [0, 0, 1, 1], [], []>} : vector<2x16xbf16>, vector<16x128xbf16>, vector<2x128xf32> -> vector<2x128xf32>
    %123 = arith.truncf %115 : vector<2x32xf32> to vector<2x32xbf16>
    %cst_43 = arith.constant dense<0.000000e+00> : vector<2x128xf32>
    %124 = tpu.matmul %123, %6, %cst_43 {dimension_numbers = #tpu.dot_dimension_numbers<[1], [0], [0], [1], [0, 0, 1, 1], [], []>} : vector<2x32xbf16>, vector<32x128xbf16>, vector<2x128xf32> -> vector<2x128xf32>
    %125 = arith.addf %122, %124 : vector<2x128xf32>
    %126 = vector.broadcast %7 : vector<1x128xf32> to vector<2x128xf32>
    %127 = arith.addf %125, %126 : vector<2x128xf32>
    %128 = vector.extract_strided_slice %127 {offsets = [0, 0], sizes = [2, 32], strides = [1, 1]} : vector<2x128xf32> to vector<2x32xf32>
    %129 = arith.negf %128 : vector<2x32xf32>
    %130 = math.exp %129 : vector<2x32xf32>
    %cst_44 = arith.constant 1.000000e+00 : f32
    %131 = vector.broadcast %cst_44 : f32 to vector<2x32xf32>
    %132 = arith.addf %131, %130 : vector<2x32xf32>
    %133 = arith.divf %131, %132 : vector<2x32xf32>
    %134 = vector.extract_strided_slice %127 {offsets = [0, 32], sizes = [2, 32], strides = [1, 1]} : vector<2x128xf32> to vector<2x32xf32>
    %135 = arith.negf %134 : vector<2x32xf32>
    %136 = math.exp %135 : vector<2x32xf32>
    %cst_45 = arith.constant 1.000000e+00 : f32
    %137 = vector.broadcast %cst_45 : f32 to vector<2x32xf32>
    %138 = arith.addf %137, %136 : vector<2x32xf32>
    %139 = arith.divf %137, %138 : vector<2x32xf32>
    %140 = vector.extract_strided_slice %127 {offsets = [0, 64], sizes = [2, 32], strides = [1, 1]} : vector<2x128xf32> to vector<2x32xf32>
    %141 = arith.negf %140 : vector<2x32xf32>
    %142 = math.exp %141 : vector<2x32xf32>
    %cst_46 = arith.constant 1.000000e+00 : f32
    %143 = vector.broadcast %cst_46 : f32 to vector<2x32xf32>
    %144 = arith.addf %143, %142 : vector<2x32xf32>
    %145 = arith.divf %143, %144 : vector<2x32xf32>
    %146 = vector.extract_strided_slice %127 {offsets = [0, 96], sizes = [2, 32], strides = [1, 1]} : vector<2x128xf32> to vector<2x32xf32>
    %147 = math.tanh %146 : vector<2x32xf32>
    %148 = arith.mulf %139, %113 : vector<2x32xf32>
    %149 = arith.mulf %133, %147 : vector<2x32xf32>
    %150 = arith.addf %148, %149 : vector<2x32xf32>
    %151 = math.tanh %150 : vector<2x32xf32>
    %152 = arith.mulf %145, %151 : vector<2x32xf32>
    %c3_47 = arith.constant 3 : index
    %c0_48 = arith.constant 0 : index
    %c0_49 = arith.constant 0 : index
    %153 = vector.load %arg7[%c3_47, %c0_48, %c0_49] : memref<8x2x32xf32, #tpu.memory_space<vmem>>, vector<1x2x32xf32>
    %154 = vector.shape_cast %153 : vector<1x2x32xf32> to vector<2x32xf32>
    %155 = vector.shape_cast %152 : vector<2x32xf32> to vector<1x2x32xf32>
    tpu.vector_store %arg7[%c3_47, %c0_48, %c0_49], %155 {strides = array<i32>} : memref<8x2x32xf32, #tpu.memory_space<vmem>>, vector<1x2x32xf32>,
    %c0_50 = arith.constant 0 : index
    %c4 = arith.constant 4 : index
    %c0_51 = arith.constant 0 : index
    %156 = vector.load %arg1[%c0_50, %c4, %c0_51] : memref<2x8x16xf32, #tpu.memory_space<vmem>>, vector<2x1x16xf32>
    %157 = vector.shape_cast %156 : vector<2x1x16xf32> to vector<2x16xf32>
    %158 = arith.truncf %157 : vector<2x16xf32> to vector<2x16xbf16>
    %cst_52 = arith.constant dense<0.000000e+00> : vector<2x128xf32>
    %159 = tpu.matmul %158, %5, %cst_52 {dimension_numbers = #tpu.dot_dimension_numbers<[1], [0], [0], [1], [0, 0, 1, 1], [], []>} : vector<2x16xbf16>, vector<16x128xbf16>, vector<2x128xf32> -> vector<2x128xf32>
    %160 = arith.truncf %152 : vector<2x32xf32> to vector<2x32xbf16>
    %cst_53 = arith.constant dense<0.000000e+00> : vector<2x128xf32>
    %161 = tpu.matmul %160, %6, %cst_53 {dimension_numbers = #tpu.dot_dimension_numbers<[1], [0], [0], [1], [0, 0, 1, 1], [], []>} : vector<2x32xbf16>, vector<32x128xbf16>, vector<2x128xf32> -> vector<2x128xf32>
    %162 = arith.addf %159, %161 : vector<2x128xf32>
    %163 = vector.broadcast %7 : vector<1x128xf32> to vector<2x128xf32>
    %164 = arith.addf %162, %163 : vector<2x128xf32>
    %165 = vector.extract_strided_slice %164 {offsets = [0, 0], sizes = [2, 32], strides = [1, 1]} : vector<2x128xf32> to vector<2x32xf32>
    %166 = arith.negf %165 : vector<2x32xf32>
    %167 = math.exp %166 : vector<2x32xf32>
    %cst_54 = arith.constant 1.000000e+00 : f32
    %168 = vector.broadcast %cst_54 : f32 to vector<2x32xf32>
    %169 = arith.addf %168, %167 : vector<2x32xf32>
    %170 = arith.divf %168, %169 : vector<2x32xf32>
    %171 = vector.extract_strided_slice %164 {offsets = [0, 32], sizes = [2, 32], strides = [1, 1]} : vector<2x128xf32> to vector<2x32xf32>
    %172 = arith.negf %171 : vector<2x32xf32>
    %173 = math.exp %172 : vector<2x32xf32>
    %cst_55 = arith.constant 1.000000e+00 : f32
    %174 = vector.broadcast %cst_55 : f32 to vector<2x32xf32>
    %175 = arith.addf %174, %173 : vector<2x32xf32>
    %176 = arith.divf %174, %175 : vector<2x32xf32>
    %177 = vector.extract_strided_slice %164 {offsets = [0, 64], sizes = [2, 32], strides = [1, 1]} : vector<2x128xf32> to vector<2x32xf32>
    %178 = arith.negf %177 : vector<2x32xf32>
    %179 = math.exp %178 : vector<2x32xf32>
    %cst_56 = arith.constant 1.000000e+00 : f32
    %180 = vector.broadcast %cst_56 : f32 to vector<2x32xf32>
    %181 = arith.addf %180, %179 : vector<2x32xf32>
    %182 = arith.divf %180, %181 : vector<2x32xf32>
    %183 = vector.extract_strided_slice %164 {offsets = [0, 96], sizes = [2, 32], strides = [1, 1]} : vector<2x128xf32> to vector<2x32xf32>
    %184 = math.tanh %183 : vector<2x32xf32>
    %185 = arith.mulf %176, %150 : vector<2x32xf32>
    %186 = arith.mulf %170, %184 : vector<2x32xf32>
    %187 = arith.addf %185, %186 : vector<2x32xf32>
    %188 = math.tanh %187 : vector<2x32xf32>
    %189 = arith.mulf %182, %188 : vector<2x32xf32>
    %c4_57 = arith.constant 4 : index
    %c0_58 = arith.constant 0 : index
    %c0_59 = arith.constant 0 : index
    %190 = vector.load %arg7[%c4_57, %c0_58, %c0_59] : memref<8x2x32xf32, #tpu.memory_space<vmem>>, vector<1x2x32xf32>
    %191 = vector.shape_cast %190 : vector<1x2x32xf32> to vector<2x32xf32>
    %192 = vector.shape_cast %189 : vector<2x32xf32> to vector<1x2x32xf32>
    tpu.vector_store %arg7[%c4_57, %c0_58, %c0_59], %192 {strides = array<i32>} : memref<8x2x32xf32, #tpu.memory_space<vmem>>, vector<1x2x32xf32>,
    %c0_60 = arith.constant 0 : index
    %c5 = arith.constant 5 : index
    %c0_61 = arith.constant 0 : index
    %193 = vector.load %arg1[%c0_60, %c5, %c0_61] : memref<2x8x16xf32, #tpu.memory_space<vmem>>, vector<2x1x16xf32>
    %194 = vector.shape_cast %193 : vector<2x1x16xf32> to vector<2x16xf32>
    %195 = arith.truncf %194 : vector<2x16xf32> to vector<2x16xbf16>
    %cst_62 = arith.constant dense<0.000000e+00> : vector<2x128xf32>
    %196 = tpu.matmul %195, %5, %cst_62 {dimension_numbers = #tpu.dot_dimension_numbers<[1], [0], [0], [1], [0, 0, 1, 1], [], []>} : vector<2x16xbf16>, vector<16x128xbf16>, vector<2x128xf32> -> vector<2x128xf32>
    %197 = arith.truncf %189 : vector<2x32xf32> to vector<2x32xbf16>
    %cst_63 = arith.constant dense<0.000000e+00> : vector<2x128xf32>
    %198 = tpu.matmul %197, %6, %cst_63 {dimension_numbers = #tpu.dot_dimension_numbers<[1], [0], [0], [1], [0, 0, 1, 1], [], []>} : vector<2x32xbf16>, vector<32x128xbf16>, vector<2x128xf32> -> vector<2x128xf32>
    %199 = arith.addf %196, %198 : vector<2x128xf32>
    %200 = vector.broadcast %7 : vector<1x128xf32> to vector<2x128xf32>
    %201 = arith.addf %199, %200 : vector<2x128xf32>
    %202 = vector.extract_strided_slice %201 {offsets = [0, 0], sizes = [2, 32], strides = [1, 1]} : vector<2x128xf32> to vector<2x32xf32>
    %203 = arith.negf %202 : vector<2x32xf32>
    %204 = math.exp %203 : vector<2x32xf32>
    %cst_64 = arith.constant 1.000000e+00 : f32
    %205 = vector.broadcast %cst_64 : f32 to vector<2x32xf32>
    %206 = arith.addf %205, %204 : vector<2x32xf32>
    %207 = arith.divf %205, %206 : vector<2x32xf32>
    %208 = vector.extract_strided_slice %201 {offsets = [0, 32], sizes = [2, 32], strides = [1, 1]} : vector<2x128xf32> to vector<2x32xf32>
    %209 = arith.negf %208 : vector<2x32xf32>
    %210 = math.exp %209 : vector<2x32xf32>
    %cst_65 = arith.constant 1.000000e+00 : f32
    %211 = vector.broadcast %cst_65 : f32 to vector<2x32xf32>
    %212 = arith.addf %211, %210 : vector<2x32xf32>
    %213 = arith.divf %211, %212 : vector<2x32xf32>
    %214 = vector.extract_strided_slice %201 {offsets = [0, 64], sizes = [2, 32], strides = [1, 1]} : vector<2x128xf32> to vector<2x32xf32>
    %215 = arith.negf %214 : vector<2x32xf32>
    %216 = math.exp %215 : vector<2x32xf32>
    %cst_66 = arith.constant 1.000000e+00 : f32
    %217 = vector.broadcast %cst_66 : f32 to vector<2x32xf32>
    %218 = arith.addf %217, %216 : vector<2x32xf32>
    %219 = arith.divf %217, %218 : vector<2x32xf32>
    %220 = vector.extract_strided_slice %201 {offsets = [0, 96], sizes = [2, 32], strides = [1, 1]} : vector<2x128xf32> to vector<2x32xf32>
    %221 = math.tanh %220 : vector<2x32xf32>
    %222 = arith.mulf %213, %187 : vector<2x32xf32>
    %223 = arith.mulf %207, %221 : vector<2x32xf32>
    %224 = arith.addf %222, %223 : vector<2x32xf32>
    %225 = math.tanh %224 : vector<2x32xf32>
    %226 = arith.mulf %219, %225 : vector<2x32xf32>
    %c5_67 = arith.constant 5 : index
    %c0_68 = arith.constant 0 : index
    %c0_69 = arith.constant 0 : index
    %227 = vector.load %arg7[%c5_67, %c0_68, %c0_69] : memref<8x2x32xf32, #tpu.memory_space<vmem>>, vector<1x2x32xf32>
    %228 = vector.shape_cast %227 : vector<1x2x32xf32> to vector<2x32xf32>
    %229 = vector.shape_cast %226 : vector<2x32xf32> to vector<1x2x32xf32>
    tpu.vector_store %arg7[%c5_67, %c0_68, %c0_69], %229 {strides = array<i32>} : memref<8x2x32xf32, #tpu.memory_space<vmem>>, vector<1x2x32xf32>,
    %c0_70 = arith.constant 0 : index
    %c6 = arith.constant 6 : index
    %c0_71 = arith.constant 0 : index
    %230 = vector.load %arg1[%c0_70, %c6, %c0_71] : memref<2x8x16xf32, #tpu.memory_space<vmem>>, vector<2x1x16xf32>
    %231 = vector.shape_cast %230 : vector<2x1x16xf32> to vector<2x16xf32>
    %232 = arith.truncf %231 : vector<2x16xf32> to vector<2x16xbf16>
    %cst_72 = arith.constant dense<0.000000e+00> : vector<2x128xf32>
    %233 = tpu.matmul %232, %5, %cst_72 {dimension_numbers = #tpu.dot_dimension_numbers<[1], [0], [0], [1], [0, 0, 1, 1], [], []>} : vector<2x16xbf16>, vector<16x128xbf16>, vector<2x128xf32> -> vector<2x128xf32>
    %234 = arith.truncf %226 : vector<2x32xf32> to vector<2x32xbf16>
    %cst_73 = arith.constant dense<0.000000e+00> : vector<2x128xf32>
    %235 = tpu.matmul %234, %6, %cst_73 {dimension_numbers = #tpu.dot_dimension_numbers<[1], [0], [0], [1], [0, 0, 1, 1], [], []>} : vector<2x32xbf16>, vector<32x128xbf16>, vector<2x128xf32> -> vector<2x128xf32>
    %236 = arith.addf %233, %235 : vector<2x128xf32>
    %237 = vector.broadcast %7 : vector<1x128xf32> to vector<2x128xf32>
    %238 = arith.addf %236, %237 : vector<2x128xf32>
    %239 = vector.extract_strided_slice %238 {offsets = [0, 0], sizes = [2, 32], strides = [1, 1]} : vector<2x128xf32> to vector<2x32xf32>
    %240 = arith.negf %239 : vector<2x32xf32>
    %241 = math.exp %240 : vector<2x32xf32>
    %cst_74 = arith.constant 1.000000e+00 : f32
    %242 = vector.broadcast %cst_74 : f32 to vector<2x32xf32>
    %243 = arith.addf %242, %241 : vector<2x32xf32>
    %244 = arith.divf %242, %243 : vector<2x32xf32>
    %245 = vector.extract_strided_slice %238 {offsets = [0, 32], sizes = [2, 32], strides = [1, 1]} : vector<2x128xf32> to vector<2x32xf32>
    %246 = arith.negf %245 : vector<2x32xf32>
    %247 = math.exp %246 : vector<2x32xf32>
    %cst_75 = arith.constant 1.000000e+00 : f32
    %248 = vector.broadcast %cst_75 : f32 to vector<2x32xf32>
    %249 = arith.addf %248, %247 : vector<2x32xf32>
    %250 = arith.divf %248, %249 : vector<2x32xf32>
    %251 = vector.extract_strided_slice %238 {offsets = [0, 64], sizes = [2, 32], strides = [1, 1]} : vector<2x128xf32> to vector<2x32xf32>
    %252 = arith.negf %251 : vector<2x32xf32>
    %253 = math.exp %252 : vector<2x32xf32>
    %cst_76 = arith.constant 1.000000e+00 : f32
    %254 = vector.broadcast %cst_76 : f32 to vector<2x32xf32>
    %255 = arith.addf %254, %253 : vector<2x32xf32>
    %256 = arith.divf %254, %255 : vector<2x32xf32>
    %257 = vector.extract_strided_slice %238 {offsets = [0, 96], sizes = [2, 32], strides = [1, 1]} : vector<2x128xf32> to vector<2x32xf32>
    %258 = math.tanh %257 : vector<2x32xf32>
    %259 = arith.mulf %250, %224 : vector<2x32xf32>
    %260 = arith.mulf %244, %258 : vector<2x32xf32>
    %261 = arith.addf %259, %260 : vector<2x32xf32>
    %262 = math.tanh %261 : vector<2x32xf32>
    %263 = arith.mulf %256, %262 : vector<2x32xf32>
    %c6_77 = arith.constant 6 : index
    %c0_78 = arith.constant 0 : index
    %c0_79 = arith.constant 0 : index
    %264 = vector.load %arg7[%c6_77, %c0_78, %c0_79] : memref<8x2x32xf32, #tpu.memory_space<vmem>>, vector<1x2x32xf32>
    %265 = vector.shape_cast %264 : vector<1x2x32xf32> to vector<2x32xf32>
    %266 = vector.shape_cast %263 : vector<2x32xf32> to vector<1x2x32xf32>
    tpu.vector_store %arg7[%c6_77, %c0_78, %c0_79], %266 {strides = array<i32>} : memref<8x2x32xf32, #tpu.memory_space<vmem>>, vector<1x2x32xf32>,
    %c0_80 = arith.constant 0 : index
    %c7 = arith.constant 7 : index
    %c0_81 = arith.constant 0 : index
    %267 = vector.load %arg1[%c0_80, %c7, %c0_81] : memref<2x8x16xf32, #tpu.memory_space<vmem>>, vector<2x1x16xf32>
    %268 = vector.shape_cast %267 : vector<2x1x16xf32> to vector<2x16xf32>
    %269 = arith.truncf %268 : vector<2x16xf32> to vector<2x16xbf16>
    %cst_82 = arith.constant dense<0.000000e+00> : vector<2x128xf32>
    %270 = tpu.matmul %269, %5, %cst_82 {dimension_numbers = #tpu.dot_dimension_numbers<[1], [0], [0], [1], [0, 0, 1, 1], [], []>} : vector<2x16xbf16>, vector<16x128xbf16>, vector<2x128xf32> -> vector<2x128xf32>
    %271 = arith.truncf %263 : vector<2x32xf32> to vector<2x32xbf16>
    %cst_83 = arith.constant dense<0.000000e+00> : vector<2x128xf32>
    %272 = tpu.matmul %271, %6, %cst_83 {dimension_numbers = #tpu.dot_dimension_numbers<[1], [0], [0], [1], [0, 0, 1, 1], [], []>} : vector<2x32xbf16>, vector<32x128xbf16>, vector<2x128xf32> -> vector<2x128xf32>
    %273 = arith.addf %270, %272 : vector<2x128xf32>
    %274 = vector.broadcast %7 : vector<1x128xf32> to vector<2x128xf32>
    %275 = arith.addf %273, %274 : vector<2x128xf32>
    %276 = vector.extract_strided_slice %275 {offsets = [0, 0], sizes = [2, 32], strides = [1, 1]} : vector<2x128xf32> to vector<2x32xf32>
    %277 = arith.negf %276 : vector<2x32xf32>
    %278 = math.exp %277 : vector<2x32xf32>
    %cst_84 = arith.constant 1.000000e+00 : f32
    %279 = vector.broadcast %cst_84 : f32 to vector<2x32xf32>
    %280 = arith.addf %279, %278 : vector<2x32xf32>
    %281 = arith.divf %279, %280 : vector<2x32xf32>
    %282 = vector.extract_strided_slice %275 {offsets = [0, 32], sizes = [2, 32], strides = [1, 1]} : vector<2x128xf32> to vector<2x32xf32>
    %283 = arith.negf %282 : vector<2x32xf32>
    %284 = math.exp %283 : vector<2x32xf32>
    %cst_85 = arith.constant 1.000000e+00 : f32
    %285 = vector.broadcast %cst_85 : f32 to vector<2x32xf32>
    %286 = arith.addf %285, %284 : vector<2x32xf32>
    %287 = arith.divf %285, %286 : vector<2x32xf32>
    %288 = vector.extract_strided_slice %275 {offsets = [0, 64], sizes = [2, 32], strides = [1, 1]} : vector<2x128xf32> to vector<2x32xf32>
    %289 = arith.negf %288 : vector<2x32xf32>
    %290 = math.exp %289 : vector<2x32xf32>
    %cst_86 = arith.constant 1.000000e+00 : f32
    %291 = vector.broadcast %cst_86 : f32 to vector<2x32xf32>
    %292 = arith.addf %291, %290 : vector<2x32xf32>
    %293 = arith.divf %291, %292 : vector<2x32xf32>
    %294 = vector.extract_strided_slice %275 {offsets = [0, 96], sizes = [2, 32], strides = [1, 1]} : vector<2x128xf32> to vector<2x32xf32>
    %295 = math.tanh %294 : vector<2x32xf32>
    %296 = arith.mulf %287, %261 : vector<2x32xf32>
    %297 = arith.mulf %281, %295 : vector<2x32xf32>
    %298 = arith.addf %296, %297 : vector<2x32xf32>
    %299 = math.tanh %298 : vector<2x32xf32>
    %300 = arith.mulf %293, %299 : vector<2x32xf32>
    %c7_87 = arith.constant 7 : index
    %c0_88 = arith.constant 0 : index
    %c0_89 = arith.constant 0 : index
    %301 = vector.load %arg7[%c7_87, %c0_88, %c0_89] : memref<8x2x32xf32, #tpu.memory_space<vmem>>, vector<1x2x32xf32>
    %302 = vector.shape_cast %301 : vector<1x2x32xf32> to vector<2x32xf32>
    %303 = vector.shape_cast %300 : vector<2x32xf32> to vector<1x2x32xf32>
    tpu.vector_store %arg7[%c7_87, %c0_88, %c0_89], %303 {strides = array<i32>} : memref<8x2x32xf32, #tpu.memory_space<vmem>>, vector<1x2x32xf32>,
    %c0_90 = arith.constant 0 : index
    %c0_91 = arith.constant 0 : index
    %304 = vector.load %arg9[%c0_90, %c0_91] : memref<2x32xf32, #tpu.memory_space<vmem>>, vector<2x32xf32>
    tpu.vector_store %arg9[%c0_90, %c0_91], %300 {strides = array<i32>} : memref<2x32xf32, #tpu.memory_space<vmem>>, vector<2x32xf32>,
    %c0_92 = arith.constant 0 : index
    %c0_93 = arith.constant 0 : index
    %305 = vector.load %arg10[%c0_92, %c0_93] : memref<2x32xf32, #tpu.memory_space<vmem>>, vector<2x32xf32>
    tpu.vector_store %arg10[%c0_92, %c0_93], %298 {strides = array<i32>} : memref<2x32xf32, #tpu.memory_space<vmem>>, vector<2x32xf32>,
    %c0_94 = arith.constant 0 : index
    %c0_95 = arith.constant 0 : index
    %306 = vector.load %arg8[%c0_94, %c0_95] : memref<2x32xf32, #tpu.memory_space<vmem>>, vector<2x32xf32>
    tpu.vector_store %arg8[%c0_94, %c0_95], %298 {strides = array<i32>} : memref<2x32xf32, #tpu.memory_space<vmem>>, vector<2x32xf32>,
    return
  }
  func.func @transform_0(%arg0: i32) -> (i32, i32, i32) {
    %c0_i32 = arith.constant 0 : i32
    %c0_i32_0 = arith.constant 0 : i32
    %c0_i32_1 = arith.constant 0 : i32
    return %c0_i32, %arg0, %c0_i32_0 : i32, i32, i32
  }
  func.func @transform_1(%arg0: i32) -> (i32, i32) {
    %c0_i32 = arith.constant 0 : i32
    %c0_i32_0 = arith.constant 0 : i32
    %c0_i32_1 = arith.constant 0 : i32
    return %c0_i32, %c0_i32_0 : i32, i32
  }
  func.func @transform_2(%arg0: i32) -> (i32, i32) {
    %c0_i32 = arith.constant 0 : i32
    %c0_i32_0 = arith.constant 0 : i32
    %c0_i32_1 = arith.constant 0 : i32
    return %c0_i32, %c0_i32_0 : i32, i32
  }
  func.func @transform_3(%arg0: i32) -> (i32, i32) {
    %c0_i32 = arith.constant 0 : i32
    %c0_i32_0 = arith.constant 0 : i32
    %c0_i32_1 = arith.constant 0 : i32
    return %c0_i32, %c0_i32_0 : i32, i32
  }
  func.func @transform_4(%arg0: i32) -> (i32, i32) {
    %c0_i32 = arith.constant 0 : i32
    %c0_i32_0 = arith.constant 0 : i32
    %c0_i32_1 = arith.constant 0 : i32
    return %c0_i32, %c0_i32_0 : i32, i32
  }
  func.func @transform_5(%arg0: i32) -> (i32, i32) {
    %c0_i32 = arith.constant 0 : i32
    %c0_i32_0 = arith.constant 0 : i32
    %c0_i32_1 = arith.constant 0 : i32
    return %c0_i32, %c0_i32_0 : i32, i32
  }
  func.func @transform_6(%arg0: i32) -> (i32, i32, i32) {
    %c0_i32 = arith.constant 0 : i32
    %c0_i32_0 = arith.constant 0 : i32
    %c0_i32_1 = arith.constant 0 : i32
    return %arg0, %c0_i32, %c0_i32_0 : i32, i32, i32
  }
  func.func @transform_7(%arg0: i32) -> (i32, i32) {
    %c0_i32 = arith.constant 0 : i32
    %c0_i32_0 = arith.constant 0 : i32
    %c0_i32_1 = arith.constant 0 : i32
    return %c0_i32, %c0_i32_0 : i32, i32
  }
}

</mosaic_0001>

<llo_original>
// kernel: tpu_custom_call.1
$region0: #{tpu_custom_call.1}
  #allocation0 [shape = 'u32[]', space=smem, size = 0x4, offset = 0x4, fixed_abs, tag = 'smem constant byte address 0x4 - core index']
  #allocation1 [shape = 'u32[144,128]{1,0:T(1,128)}', space=vmem, size = 0x12000, scoped, tag = 'internal scratch']
  #allocation2 [shape = 'f32[2,32]{1,0:T(2,128)}', space=vmem, size = 0x400, scoped, tag = 'scratch operand']
  #allocation3 [shape = 'f32[2,32]{1,0:T(2,128)}', space=vmem, size = 0x400, scoped, tag = 'scratch operand']
  %s0 = inlined_call_operand.hbm [shape: f32[2,16,16], index: 0, kind: input, shape index: {}]
  %s1 = inlined_call_operand.hbm [shape: f32[2,32], index: 1, kind: input, shape index: {}]
  %s2 = inlined_call_operand.vmem [shape: f32[2,32], index: 2, kind: input, shape index: {}]
  %s3 = inlined_call_operand.hbm [shape: bf16[16,128], index: 3, kind: input, shape index: {}]
  %s4 = inlined_call_operand.hbm [shape: bf16[32,128], index: 4, kind: input, shape index: {}]
  %s5 = inlined_call_operand.vmem [shape: f32[1,128], index: 5, kind: input, shape index: {}]
  %s6 = inlined_call_operand.hbm [shape: f32[16,2,32], index: 6, kind: output, shape index: {0}]
  %s7 = inlined_call_operand.hbm [shape: f32[2,32], index: 7, kind: output, shape index: {1}]
  %8 = xla_tuple %s6, %s7
  %s9 = sld [smem:[#allocation0]]
  $region85: #{tpu_custom_call.1} parent=0
    _
  %s11 = ssub.s32 1, %s9
  %s12 = scalar_select 0, %s11, %s9
  $region1: #{tpu_custom_call.1} parent=0
    #allocation4 [shape = 'u8[16384]{0}', space=vmem, size = 0x4000, scoped, tag = 'input window, operand 0']
    #allocation5 [shape = 's32[2]{0}', space=sflag, size = 0x8, scoped, tag = 'scoped memory for tpu_custom_call.1']
    #allocation6 [shape = 's32[2]{0}', space=sflag, size = 0x8, scoped, tag = 'scoped memory for tpu_custom_call.1']
    #allocation7 [shape = 'u8[1024]{0}', space=vmem, size = 0x400, scoped, tag = 'input window, operand 1, single buffered']
    #allocation8 [shape = 's32[1]{0}', space=sflag, size = 0x4, scoped, tag = 'scoped memory for tpu_custom_call.1']
    #allocation9 [shape = 'u8[4096]{0}', space=vmem, size = 0x1000, scoped, tag = 'input window, operand 3, single buffered']
    #allocation10 [shape = 'u8[8192]{0}', space=vmem, size = 0x2000, scoped, tag = 'input window, operand 4, single buffered']
    #allocation11 [shape = 's32[1]{0}', space=sflag, size = 0x4, scoped, tag = 'scoped memory for tpu_custom_call.1']
    #allocation12 [shape = 'u8[16384]{0}', space=vmem, size = 0x4000, scoped, tag = 'output window, operand 0']
    #allocation13 [shape = 'u8[1024]{0}', space=vmem, size = 0x400, scoped, tag = 'output window, operand 1, single buffered']
    #allocation14 [shape = 's32[1]{0}', space=sflag, size = 0x4, scoped, tag = 'scoped memory for tpu_custom_call.1']
    %13 = vsyncpa [#allocation5], 0
    %s14 = scalar_lea.sflag [#allocation5], 1
    %15 = vsyncpa %s14, 0
    %16 = vsyncpa [#allocation8], 0
    %17 = vsyncpa [#allocation11], 0
    %18 = vsyncpa [#allocation6], 0
    %s19 = scalar_lea.sflag [#allocation6], 1
    %20 = vsyncpa %s19, 0
    %21 = vsyncpa [#allocation14], 0
    loop: start=0, step=1, limit=4
    $region2: #{tpu_custom_call.1} parent=1 // loop_pre_header
      _
    $region3: #{tpu_custom_call.1} parent=1 // loop_header
      %s23 = sphi 0, %s27
      %p24 = scmp.ge.s32.totalorder %s23, 4
      %s33 = sphi 0, %s35
      %s36 = sphi 0, %s33
      %s37 = sphi 0, %s36
      %s53 = sphi 0, %s37
      %s57 = sphi 0, %s57
      %s59 = sphi 0, %s57
      %s60 = sphi 0, %s59
      %s74 = sphi 0, %s60
      %s78 = sphi 0, %s78
      %s80 = sphi 0, %s78
      %s81 = sphi 0, %s80
      %s95 = sphi 0, %s81
      %s99 = sphi 0, %s99
      %s101 = sphi 0, %s99
      %s102 = sphi 0, %s101
      %s116 = sphi 0, %s102
      %s120 = sphi 0, %s120
      %s122 = sphi 0, %s120
      %s123 = sphi 0, %s122
      %s137 = sphi 0, %s123
      %s141 = sphi 0, %s141
      %s143 = sphi 0, %s141
      %s144 = sphi 0, %s143
      %s158 = sphi 0, %s144
      %s164 = sphi 0, %s166
      %s167 = sphi 0, %s164
      %s168 = sphi 0, %s167
      %s184 = sphi 0, %s168
      %s188 = sphi 0, %s188
      %s190 = sphi 0, %s188
      %s191 = sphi 0, %s190
      %s205 = sphi 0, %s191
    $region4: #{tpu_custom_call.1} parent=1 // loop_header_branch
      %26 = sbr.rel (%p24) target = $region8
    $region5: #{tpu_custom_call.1} parent=1 // loop_body
      %s28 = ssub.s32 %s23, 1
      %s29 = ssub.s32 %s23, 2
      %s30 = sadd.s32 %s23, 1
      %s31 = ssub.s32 %s23, %s30
      %p32 = scmp.eq.s32.totalorder %s31, 0
      %s34 = sadd.s32 %s33, 1
      %s35 = scalar_select %p32, %s33, %s34
      %p38 = pneg %p32
      %p39 = scmp.eq.s32.totalorder %s23, 1
      %p40 = por %p38, %p39
      %p41 = scmp.ne.s32.totalorder %s33, %s36
      %p42 = scmp.eq.s32.totalorder %s23, 0
      %p43 = por %p41, %p42
      %p44 = scmp.ne.s32.totalorder %s33, %s36
      %p45 = scmp.eq.s32.totalorder %s28, 1
      %p46 = por %p44, %p45
      %p47 = scmp.ne.s32.totalorder %s36, %s37
      %p48 = scmp.eq.s32.totalorder %s28, 0
      %p49 = por %p47, %p48
      %p50 = scmp.ne.s32.totalorder %s36, %s37
      %p51 = scmp.eq.s32.totalorder %s29, 1
      %p52 = por %p50, %p51
      %p54 = scmp.ne.s32.totalorder %s37, %s53
      %p55 = scmp.eq.s32.totalorder %s29, 0
      %p56 = por %p54, %p55
      %s58 = sadd.s32 %s57, 1
      %p61 = scmp.eq.s32.totalorder %s23, 1
      %p62 = scmp.ne.s32.totalorder %s57, %s59
      %p63 = scmp.eq.s32.totalorder %s23, 0
      %p64 = por %p62, %p63
      %p65 = scmp.ne.s32.totalorder %s57, %s59
      %p66 = scmp.eq.s32.totalorder %s28, 1
      %p67 = por %p65, %p66
      %p68 = scmp.ne.s32.totalorder %s59, %s60
      %p69 = scmp.eq.s32.totalorder %s28, 0
      %p70 = por %p68, %p69
      %p71 = scmp.ne.s32.totalorder %s59, %s60
      %p72 = scmp.eq.s32.totalorder %s29, 1
      %p73 = por %p71, %p72
      %p75 = scmp.ne.s32.totalorder %s60, %s74
      %p76 = scmp.eq.s32.totalorder %s29, 0
      %p77 = por %p75, %p76
      %s79 = sadd.s32 %s78, 1
      %p82 = scmp.eq.s32.totalorder %s23, 1
      %p83 = scmp.ne.s32.totalorder %s78, %s80
      %p84 = scmp.eq.s32.totalorder %s23, 0
      %p85 = por %p83, %p84
      %p86 = scmp.ne.s32.totalorder %s78, %s80
      %p87 = scmp.eq.s32.totalorder %s28, 1
      %p88 = por %p86, %p87
      %p89 = scmp.ne.s32.totalorder %s80, %s81
      %p90 = scmp.eq.s32.totalorder %s28, 0
      %p91 = por %p89, %p90
      %p92 = scmp.ne.s32.totalorder %s80, %s81
      %p93 = scmp.eq.s32.totalorder %s29, 1
      %p94 = por %p92, %p93
      %p96 = scmp.ne.s32.totalorder %s81, %s95
      %p97 = scmp.eq.s32.totalorder %s29, 0
      %p98 = por %p96, %p97
      %s100 = sadd.s32 %s99, 1
      %p103 = scmp.eq.s32.totalorder %s23, 1
      %p104 = scmp.ne.s32.totalorder %s99, %s101
      %p105 = scmp.eq.s32.totalorder %s23, 0
      %p106 = por %p104, %p105
      %p107 = scmp.ne.s32.totalorder %s99, %s101
      %p108 = scmp.eq.s32.totalorder %s28, 1
      %p109 = por %p107, %p108
      %p110 = scmp.ne.s32.totalorder %s101, %s102
      %p111 = scmp.eq.s32.totalorder %s28, 0
      %p112 = por %p110, %p111
      %p113 = scmp.ne.s32.totalorder %s101, %s102
      %p114 = scmp.eq.s32.totalorder %s29, 1
      %p115 = por %p113, %p114
      %p117 = scmp.ne.s32.totalorder %s102, %s116
      %p118 = scmp.eq.s32.totalorder %s29, 0
      %p119 = por %p117, %p118
      %s121 = sadd.s32 %s120, 1
      %p124 = scmp.eq.s32.totalorder %s23, 1
      %p125 = scmp.ne.s32.totalorder %s120, %s122
      %p126 = scmp.eq.s32.totalorder %s23, 0
      %p127 = por %p125, %p126
      %p128 = scmp.ne.s32.totalorder %s120, %s122
      %p129 = scmp.eq.s32.totalorder %s28, 1
      %p130 = por %p128, %p129
      %p131 = scmp.ne.s32.totalorder %s122, %s123
      %p132 = scmp.eq.s32.totalorder %s28, 0
      %p133 = por %p131, %p132
      %p134 = scmp.ne.s32.totalorder %s122, %s123
      %p135 = scmp.eq.s32.totalorder %s29, 1
      %p136 = por %p134, %p135
      %p138 = scmp.ne.s32.totalorder %s123, %s137
      %p139 = scmp.eq.s32.totalorder %s29, 0
      %p140 = por %p138, %p139
      %s142 = sadd.s32 %s141, 1
      %p145 = scmp.eq.s32.totalorder %s23, 1
      %p146 = scmp.ne.s32.totalorder %s141, %s143
      %p147 = scmp.eq.s32.totalorder %s23, 0
      %p148 = por %p146, %p147
      %p149 = scmp.ne.s32.totalorder %s141, %s143
      %p150 = scmp.eq.s32.totalorder %s28, 1
      %p151 = por %p149, %p150
      %p152 = scmp.ne.s32.totalorder %s143, %s144
      %p153 = scmp.eq.s32.totalorder %s28, 0
      %p154 = por %p152, %p153
      %p155 = scmp.ne.s32.totalorder %s143, %s144
      %p156 = scmp.eq.s32.totalorder %s29, 1
      %p157 = por %p155, %p156
      %p159 = scmp.ne.s32.totalorder %s144, %s158
      %p160 = scmp.eq.s32.totalorder %s29, 0
      %p161 = por %p159, %p160
      %s162 = ssub.s32 %s23, %s30
      %p163 = scmp.eq.s32.totalorder %s162, 0
      %s165 = sadd.s32 %s164, 1
      %s166 = scalar_select %p163, %s164, %s165
      %p169 = pneg %p163
      %p170 = scmp.eq.s32.totalorder %s23, 1
      %p171 = por %p169, %p170
      %p172 = scmp.ne.s32.totalorder %s164, %s167
      %p173 = scmp.eq.s32.totalorder %s23, 0
      %p174 = por %p172, %p173
      %p175 = scmp.ne.s32.totalorder %s164, %s167
      %p176 = scmp.eq.s32.totalorder %s28, 1
      %p177 = por %p175, %p176
      %p178 = scmp.ne.s32.totalorder %s167, %s168
      %p179 = scmp.eq.s32.totalorder %s28, 0
      %p180 = por %p178, %p179
      %p181 = scmp.ne.s32.totalorder %s167, %s168
      %p182 = scmp.eq.s32.totalorder %s29, 1
      %p183 = por %p181, %p182
      %p185 = scmp.ne.s32.totalorder %s168, %s184
      %p186 = scmp.eq.s32.totalorder %s29, 0
      %p187 = por %p185, %p186
      %s189 = sadd.s32 %s188, 1
      %p192 = scmp.eq.s32.totalorder %s23, 1
      %p193 = scmp.ne.s32.totalorder %s188, %s190
      %p194 = scmp.eq.s32.totalorder %s23, 0
      %p195 = por %p193, %p194
      %p196 = scmp.ne.s32.totalorder %s188, %s190
      %p197 = scmp.eq.s32.totalorder %s28, 1
      %p198 = por %p196, %p197
      %p199 = scmp.ne.s32.totalorder %s190, %s191
      %p200 = scmp.eq.s32.totalorder %s28, 0
      %p201 = por %p199, %p200
      %p202 = scmp.ne.s32.totalorder %s190, %s191
      %p203 = scmp.eq.s32.totalorder %s29, 1
      %p204 = por %p202, %p203
      %p206 = scmp.ne.s32.totalorder %s191, %s205
      %p207 = scmp.eq.s32.totalorder %s29, 0
      %p208 = por %p206, %p207
      %p209 = scmp.le.s32.totalorder 1, %s23
      %p210 = scmp.lt.s32.totalorder %s23, 3
      %p211 = pnand %p209, %p210
      %p212 = pneg %p211
      // Predicated region
      $region9: #{tpu_custom_call.1} parent=5 // pred_check
        _
      $region10: #{tpu_custom_call.1} parent=5 // pred_check_branch
        %214 = sbr.rel (%p211) target = $region12
      $region11: #{tpu_custom_call.1} parent=5 // pred_region
        %s215 = ssub.s32 %s23, 1
        // Predicated region
        $region13: #{tpu_custom_call.1} parent=11 // pred_check
          %p216 = pneg %p70
        $region14: #{tpu_custom_call.1} parent=11 // pred_check_branch
          %218 = sbr.rel (%p216) target = $region16
        $region15: #{tpu_custom_call.1} parent=11 // pred_region
          %s220 = ssub.s32 32, 32
          %221 = vsyncadd [#allocation8], %s220
          %s223 = sshll.u32 [#allocation7], 4
          %s224 = int_to_ptr.vmem [resolvable:$true] %s223
          %226 = dma.hbm_to_vmem [thread:$0]  %s1, 32, %s224, [#allocation8]
        $region16: #{tpu_custom_call.1} parent=11 // pred_fallthru
          _
        // Predicated region
        $region17: #{tpu_custom_call.1} parent=11 // pred_check
          %p227 = pneg %p91
        $region18: #{tpu_custom_call.1} parent=11 // pred_check_branch
          %229 = sbr.rel (%p227) target = $region20
        $region19: #{tpu_custom_call.1} parent=11 // pred_region
          _
        $region20: #{tpu_custom_call.1} parent=11 // pred_fallthru
          _
        // Predicated region
        $region21: #{tpu_custom_call.1} parent=11 // pred_check
          %p230 = pneg %p112
        $region22: #{tpu_custom_call.1} parent=11 // pred_check_branch
          %232 = sbr.rel (%p230) target = $region24
        $region23: #{tpu_custom_call.1} parent=11 // pred_region
          %s234 = ssub.s32 128, 128
          %235 = vsyncadd [#allocation8], %s234
          %s236 = sshll.u32 [#allocation9], 4
          %s237 = int_to_ptr.vmem [resolvable:$true] %s236
          %242 = dma.hbm_to_vmem [thread:$0]  %s3, 128, %s237, [#allocation8], 64, 64, 4
        $region24: #{tpu_custom_call.1} parent=11 // pred_fallthru
          _
        // Predicated region
        $region25: #{tpu_custom_call.1} parent=11 // pred_check
          %p243 = pneg %p133
        $region26: #{tpu_custom_call.1} parent=11 // pred_check_branch
          %245 = sbr.rel (%p243) target = $region28
        $region27: #{tpu_custom_call.1} parent=11 // pred_region
          %s247 = ssub.s32 256, 256
          %248 = vsyncadd [#allocation11], %s247
          %s249 = sshll.u32 [#allocation10], 4
          %s250 = int_to_ptr.vmem [resolvable:$true] %s249
          %255 = dma.hbm_to_vmem [thread:$0]  %s4, 256, %s250, [#allocation11], 64, 64, 4
        $region28: #{tpu_custom_call.1} parent=11 // pred_fallthru
          _
        // Predicated region
        $region29: #{tpu_custom_call.1} parent=11 // pred_check
          %p256 = pneg %p154
        $region30: #{tpu_custom_call.1} parent=11 // pred_check_branch
          %258 = sbr.rel (%p256) target = $region32
        $region31: #{tpu_custom_call.1} parent=11 // pred_region
          _
        $region32: #{tpu_custom_call.1} parent=11 // pred_fallthru
          _
      $region12: #{tpu_custom_call.1} parent=5 // pred_fallthru
        _
      %p259 = scmp.lt.s32.totalorder %s23, 2
      // Predicated region
      $region33: #{tpu_custom_call.1} parent=5 // pred_check
        %p260 = pneg %p259
      $region34: #{tpu_custom_call.1} parent=5 // pred_check_branch
        %262 = sbr.rel (%p260) target = $region36
      $region35: #{tpu_custom_call.1} parent=5 // pred_region
        // Predicated region
        $region37: #{tpu_custom_call.1} parent=35 // pred_check
          %p263 = pneg %p43
        $region38: #{tpu_custom_call.1} parent=35 // pred_check_branch
          %265 = sbr.rel (%p263) target = $region40
        $region39: #{tpu_custom_call.1} parent=35 // pred_region
          %s266 = sand.u32 %s33, 1
          %s267 = scalar_lea.sflag [#allocation5], %s266
          %s268 = sand.u32 %s33, 1
          %s269 = smul.addr %s268, 16
          %s270 = scalar_lea.vmem [#allocation4], %s269
          %s272 = ssub.s32 256, 256
          %273 = vsyncadd %s267, %s272
          %s274 = smul.addr %s23, 128
          %s275 = scalar_lea.hbm %s0, %s274
          %s276 = sshll.u32 %s270, 4
          %s277 = int_to_ptr.vmem [resolvable:$true] %s276
          %282 = dma.hbm_to_vmem [thread:$0]  %s275, 256, %s277, %s267, 256, 128, 8
        $region40: #{tpu_custom_call.1} parent=35 // pred_fallthru
          _
      $region36: #{tpu_custom_call.1} parent=5 // pred_fallthru
        _
      %p283 = scmp.le.s32.totalorder 1, %s23
      %p284 = scmp.lt.s32.totalorder %s23, 3
      %p285 = pnand %p283, %p284
      %p286 = pneg %p285
      // Predicated region
      $region41: #{tpu_custom_call.1} parent=5 // pred_check
        _
      $region42: #{tpu_custom_call.1} parent=5 // pred_check_branch
        %288 = sbr.rel (%p285) target = $region44
      $region43: #{tpu_custom_call.1} parent=5 // pred_region
        %s289 = ssub.s32 %s23, 1
        %s290 = sand.u32 %s36, 1
        %s291 = scalar_lea.sflag [#allocation5], %s290
        %s292 = sand.u32 %s36, 1
        %s293 = smul.addr %s292, 16
        %s294 = scalar_lea.vmem [#allocation4], %s293
        // Predicated region
        $region45: #{tpu_custom_call.1} parent=43 // pred_check
          %p295 = pneg %p49
        $region46: #{tpu_custom_call.1} parent=43 // pred_check_branch
          %297 = sbr.rel (%p295) target = $region48
        $region47: #{tpu_custom_call.1} parent=43 // pred_region
          %298 = dma.done %s291, 256
        $region48: #{tpu_custom_call.1} parent=43 // pred_fallthru
          _
        // Predicated region
        $region49: #{tpu_custom_call.1} parent=43 // pred_check
          %p299 = pneg %p70
        $region50: #{tpu_custom_call.1} parent=43 // pred_check_branch
          %301 = sbr.rel (%p299) target = $region52
        $region51: #{tpu_custom_call.1} parent=43 // pred_region
          %302 = dma.done [#allocation8], 32
        $region52: #{tpu_custom_call.1} parent=43 // pred_fallthru
          _
        // Predicated region
        $region53: #{tpu_custom_call.1} parent=43 // pred_check
          %p303 = pneg %p112
        $region54: #{tpu_custom_call.1} parent=43 // pred_check_branch
          %305 = sbr.rel (%p303) target = $region56
        $region55: #{tpu_custom_call.1} parent=43 // pred_region
          %306 = dma.done [#allocation8], 128
        $region56: #{tpu_custom_call.1} parent=43 // pred_fallthru
          _
        // Predicated region
        $region57: #{tpu_custom_call.1} parent=43 // pred_check
          %p307 = pneg %p133
        $region58: #{tpu_custom_call.1} parent=43 // pred_check_branch
          %309 = sbr.rel (%p307) target = $region60
        $region59: #{tpu_custom_call.1} parent=43 // pred_region
          %310 = dma.done [#allocation11], 256
        $region60: #{tpu_custom_call.1} parent=43 // pred_fallthru
          _
        %s311 = sand.u32 %s36, 1
        %s312 = scalar_lea.sflag [#allocation5], %s311
        %s313 = sand.u32 %s36, 1
        %s314 = smul.addr %s313, 16
        %s315 = scalar_lea.vmem [#allocation4], %s314
        %p316 = pneg %p49
        %p317 = pneg %p46
        %p318 = pneg %p70
        %p319 = pneg %p67
        %p320 = pneg %p91
        %p321 = pneg %p88
        %p322 = pneg %p112
        %p323 = pneg %p109
        %p324 = pneg %p133
        %p325 = pneg %p130
        %p326 = pneg %p154
        %p327 = pneg %p151
        %p328 = pneg %p180
        %p329 = pneg %p177
        %s330 = sand.u32 %s167, 1
        %s331 = scalar_lea.sflag [#allocation6], %s330
        %s332 = sand.u32 %s167, 1
        %s333 = smul.addr %s332, 16
        %s334 = scalar_lea.vmem [#allocation12], %s333
        %p335 = pneg %p201
        %p336 = pneg %p198
        %s337 = smul.u32 8, %s28
        %p339 = scmp.eq.s32.totalorder %s28, 0
        // Predicated region
        $region61: #{tpu_custom_call.1} parent=43 // pred_check
          %p340 = pneg %p339
        $region62: #{tpu_custom_call.1} parent=43 // pred_check_branch
          %342 = sbr.rel (%p340) target = $region64
        $region63: #{tpu_custom_call.1} parent=43 // pred_region
          %v343 = vld [vmem:[#allocation7] sm:$0x3]
          %vm344 = vcmask 254976
          %345 = vst.msk [vmem:[#allocation2] sm:$0x3] %vm344, %v343
          %v346 = vld [vmem:[%s2] sm:$0x3]
          %347 = vst.msk [vmem:[#allocation3] sm:$0x3] %vm344, %v346
        $region64: #{tpu_custom_call.1} parent=43 // pred_fallthru
          _
        %v348 = vld [vmem:[#allocation2] sm:$0x3]
        %v349 = vld [vmem:[#allocation3] sm:$0x3]
        %v350 = vld [vmem:[#allocation9] sm:$0xf]
        %v351 = vld [vmem:[#allocation9 + $0x4] sm:$0xf]
        %v352 = vld [vmem:[#allocation10] sm:$0xf]
        %v353 = vld [vmem:[#allocation10 + $0x4] sm:$0xf]
        %v354 = vld [vmem:[#allocation10 + $0x8] sm:$0xf]
        %v355 = vld [vmem:[#allocation10 + $0xc] sm:$0xf]
        %v356 = vld [vmem:[%s5] sm:$0x1]
        %v357 = vld [vmem:[%s294] sm:$0x1]
        %v358 = vld [vmem:[%s294 + $0x8] sm:$0x1]
        %v359 = vpack.c.bf16 %v357, %v357
        %v360 = vpack.c.bf16 %v358, %v358
        %v361 = vpack.c.bf16 %v348, %v348
        %v366 = vunpack.c.l.b16 %v352
        %v367 = vunpack.c.l.b16 %v353
        %v368 = vunpack.c.l.b16 %v354
        %v369 = vunpack.c.l.b16 %v355
        %v370 = vpack.c.b16 %v367, %v366
        %v371 = vpack.c.b16 %v369, %v368
        %vm374 = vcmask 261120
        %v376 = vsel %vm374, %v361, 0
        %378 = vmatprep.subr.bf16.mxu0 0
        %379 = vmatpush1.bf16.msra.mxu0 0
        %380 = vmatprep.subr.bf16.mxu0 0
        %381 = vmatpush1.bf16.msra.mxu0 0
        %382 = vmatprep.subr.bf16.mxu0 0
        %383 = vmatpush1.bf16.msra.mxu0 0
        %384 = vmatprep.subr.bf16.mxu0 0
        %385 = vmatpush1.bf16.msra.mxu0 0
        %386 = vmatprep.subr.bf16.mxu0 0
        %387 = vmatpush1.bf16.msra.mxu0 0
        %388 = vmatprep.subr.bf16.mxu0 0
        %389 = vmatpush1.bf16.msra.mxu0 0
        %390 = vmatprep.subr.bf16.mxu0 0
        %391 = vmatpush1.bf16.msra.mxu0 %v371
        %392 = vmatprep.subr.bf16.mxu0 0
        %393 = vmatpush1.bf16.msra.mxu0 %v370
        %394 = vmatprep.subr.bf16.mxu0 0
        %395 = vmatpush2.bf16.msra.mxu0 0
        %396 = vmatprep.subr.bf16.mxu0 0
        %397 = vmatpush2.bf16.msra.mxu0 0
        %398 = vmatprep.subr.bf16.mxu0 0
        %399 = vmatpush2.bf16.msra.mxu0 0
        %400 = vmatprep.subr.bf16.mxu0 0
        %401 = vmatpush2.bf16.msra.mxu0 0
        %402 = vmatprep.subr.bf16.mxu0 0
        %403 = vmatpush2.bf16.msra.mxu0 0
        %404 = vmatprep.subr.bf16.mxu0 0
        %405 = vmatpush2.bf16.msra.mxu0 0
        %406 = vmatprep.subr.bf16.mxu0 0
        %407 = vmatpush2.bf16.msra.mxu0 0
        %408 = vmatprep.subr.bf16.mxu0 0
        %409 = vmatpush2.bf16.msra.mxu0 0
        %410 = vmatprep.mubr.bf16.mxu0 0
        %411 = vmatmul.mubr.bf16.gmra.mxu0 %v376
        %v412 = vpop.f32.mrf.mxu0
        %v413 = vadd.f32 0.0, %v412
        %v414 = vpop.f32.mrf.mxu0
        %v415 = vpop.f32.mrf.mxu0
        %v416 = vpop.f32.mrf.mxu0
        %417 = vdwg.mxu0
        %v420 = vunpack.c.l.b16 %v359
        %v421 = vunpack.c.l.b16 %v360
        %v422 = vrot.slane %v421, 7
        %vm423 = vcmask 1041409
        %v424 = vsel %vm423, %v422, %v420
        %v425 = vpack.c.b16 %v424, %v424
        %v428 = vunpack.c.l.b16 %v350
        %v429 = vunpack.c.l.b16 %v351
        %v430 = vpack.c.b16 %v429, %v428
        %vm432 = vcmask 130048
        %v434 = vsel %vm432, %v425, 0
        %436 = vmatprep.subr.bf16.mxu0 0
        %437 = vmatpush1.bf16.msra.mxu0 0
        %438 = vmatprep.subr.bf16.mxu0 0
        %439 = vmatpush1.bf16.msra.mxu0 0
        %440 = vmatprep.subr.bf16.mxu0 0
        %441 = vmatpush1.bf16.msra.mxu0 0
        %442 = vmatprep.subr.bf16.mxu0 0
        %443 = vmatpush1.bf16.msra.mxu0 0
        %444 = vmatprep.subr.bf16.mxu0 0
        %445 = vmatpush1.bf16.msra.mxu0 0
        %446 = vmatprep.subr.bf16.mxu0 0
        %447 = vmatpush1.bf16.msra.mxu0 0
        %448 = vmatprep.subr.bf16.mxu0 0
        %449 = vmatpush1.bf16.msra.mxu0 0
        %450 = vmatprep.subr.bf16.mxu0 0
        %451 = vmatpush1.bf16.msra.mxu0 %v430
        %452 = vmatprep.subr.bf16.mxu0 0
        %453 = vmatpush2.bf16.msra.mxu0 0
        %454 = vmatprep.subr.bf16.mxu0 0
        %455 = vmatpush2.bf16.msra.mxu0 0
        %456 = vmatprep.subr.bf16.mxu0 0
        %457 = vmatpush2.bf16.msra.mxu0 0
        %458 = vmatprep.subr.bf16.mxu0 0
        %459 = vmatpush2.bf16.msra.mxu0 0
        %460 = vmatprep.subr.bf16.mxu0 0
        %461 = vmatpush2.bf16.msra.mxu0 0
        %462 = vmatprep.subr.bf16.mxu0 0
        %463 = vmatpush2.bf16.msra.mxu0 0
        %464 = vmatprep.subr.bf16.mxu0 0
        %465 = vmatpush2.bf16.msra.mxu0 0
        %466 = vmatprep.subr.bf16.mxu0 0
        %467 = vmatpush2.bf16.msra.mxu0 0
        %468 = vmatprep.mubr.bf16.mxu0 0
        %469 = vmatmul.mubr.bf16.gmra.mxu0 %v434
        %v470 = vpop.f32.mrf.mxu0
        %v471 = vadd.f32 %v413, %v470
        %v472 = vpop.f32.mrf.mxu0
        %v473 = vpop.f32.mrf.mxu0
        %v474 = vpop.f32.mrf.mxu0
        %475 = vdwg.mxu0
        %v477 = vlaneseq
        %v478 = vshrl.u32 %v477, 7
        %v479 = vsub.s32 0, %v478
        %v480 = vrot.slane %v356, %v479
        %v482 = vadd.f32 %v471, %v480
        %v483 = vxor.u32 %v482, 2147483648
        %v484 = vmul.f32 %v483, 1.442695
        %v485 = vpow.pop %v484
        %v486 = vadd.f32 %v485, 1.0
        %v487 = vrcp.pop %v486
        %v488 = vmul.f32 1.0, %v487
        %v489 = vtanh.pop %v482
        %491 = vrot.lane.b32.xlu0 %v349, 32
        %v492 = vpop.permute.xlu0 %491
        %v494 = vmul.f32 %v488, %v492
        %496 = vrot.lane.b32.xlu0 %v489, 32
        %v497 = vpop.permute.xlu0 %496
        %v499 = vmul.f32 %v488, %v497
        %501 = vrot.lane.b32.xlu0 %v499, 32
        %v502 = vpop.permute.xlu0 %501
        %v504 = vadd.f32 %v494, %v502
        %v505 = vtanh.pop %v504
        %507 = vrot.lane.b32.xlu0 %v505, 32
        %v508 = vpop.permute.xlu0 %507
        %v510 = vmul.f32 %v488, %v508
        %512 = vrot.lane.b32.xlu0 %v510, 64
        %v513 = vpop.permute.xlu0 %512
        %vm515 = vcmask 254976
        %516 = vst.msk [vmem:[%s334] sm:$0x3] %vm515, %v513
        %v517 = vld [vmem:[%s294 + $0x1] sm:$0x1]
        %v518 = vld [vmem:[%s294 + $0x9] sm:$0x1]
        %v519 = vpack.c.bf16 %v517, %v517
        %v520 = vpack.c.bf16 %v518, %v518
        %v521 = vpack.c.bf16 %v510, %v510
        %523 = vrot.lane.b32.xlu0 %v521, 64
        %v524 = vpop.permute.xlu0 %523
        %v526 = vsel %vm374, %v524, 0
        %528 = vmatprep.subr.bf16.mxu0 0
        %529 = vmatpush1.bf16.msra.mxu0 0
        %530 = vmatprep.subr.bf16.mxu0 0
        %531 = vmatpush1.bf16.msra.mxu0 0
        %532 = vmatprep.subr.bf16.mxu0 0
        %533 = vmatpush1.bf16.msra.mxu0 0
        %534 = vmatprep.subr.bf16.mxu0 0
        %535 = vmatpush1.bf16.msra.mxu0 0
        %536 = vmatprep.subr.bf16.mxu0 0
        %537 = vmatpush1.bf16.msra.mxu0 0
        %538 = vmatprep.subr.bf16.mxu0 0
        %539 = vmatpush1.bf16.msra.mxu0 0
        %540 = vmatprep.subr.bf16.mxu0 0
        %541 = vmatpush1.bf16.msra.mxu0 %v371
        %542 = vmatprep.subr.bf16.mxu0 0
        %543 = vmatpush1.bf16.msra.mxu0 %v370
        %544 = vmatprep.subr.bf16.mxu0 0
        %545 = vmatpush2.bf16.msra.mxu0 0
        %546 = vmatprep.subr.bf16.mxu0 0
        %547 = vmatpush2.bf16.msra.mxu0 0
        %548 = vmatprep.subr.bf16.mxu0 0
        %549 = vmatpush2.bf16.msra.mxu0 0
        %550 = vmatprep.subr.bf16.mxu0 0
        %551 = vmatpush2.bf16.msra.mxu0 0
        %552 = vmatprep.subr.bf16.mxu0 0
        %553 = vmatpush2.bf16.msra.mxu0 0
        %554 = vmatprep.subr.bf16.mxu0 0
        %555 = vmatpush2.bf16.msra.mxu0 0
        %556 = vmatprep.subr.bf16.mxu0 0
        %557 = vmatpush2.bf16.msra.mxu0 0
        %558 = vmatprep.subr.bf16.mxu0 0
        %559 = vmatpush2.bf16.msra.mxu0 0
        %560 = vmatprep.mubr.bf16.mxu0 0
        %561 = vmatmul.mubr.bf16.gmra.mxu0 %v526
        %v562 = vpop.f32.mrf.mxu0
        %v563 = vadd.f32 0.0, %v562
        %v564 = vpop.f32.mrf.mxu0
        %v565 = vpop.f32.mrf.mxu0
        %v566 = vpop.f32.mrf.mxu0
        %567 = vdwg.mxu0
        %v570 = vunpack.c.l.b16 %v519
        %v571 = vunpack.c.l.b16 %v520
        %v572 = vrot.slane %v571, 7
        %v573 = vsel %vm423, %v572, %v570
        %v574 = vpack.c.b16 %v573, %v573
        %v576 = vsel %vm432, %v574, 0
        %578 = vmatprep.subr.bf16.mxu0 0
        %579 = vmatpush1.bf16.msra.mxu0 0
        %580 = vmatprep.subr.bf16.mxu0 0
        %581 = vmatpush1.bf16.msra.mxu0 0
        %582 = vmatprep.subr.bf16.mxu0 0
        %583 = vmatpush1.bf16.msra.mxu0 0
        %584 = vmatprep.subr.bf16.mxu0 0
        %585 = vmatpush1.bf16.msra.mxu0 0
        %586 = vmatprep.subr.bf16.mxu0 0
        %587 = vmatpush1.bf16.msra.mxu0 0
        %588 = vmatprep.subr.bf16.mxu0 0
        %589 = vmatpush1.bf16.msra.mxu0 0
        %590 = vmatprep.subr.bf16.mxu0 0
        %591 = vmatpush1.bf16.msra.mxu0 0
        %592 = vmatprep.subr.bf16.mxu0 0
        %593 = vmatpush1.bf16.msra.mxu0 %v430
        %594 = vmatprep.subr.bf16.mxu0 0
        %595 = vmatpush2.bf16.msra.mxu0 0
        %596 = vmatprep.subr.bf16.mxu0 0
        %597 = vmatpush2.bf16.msra.mxu0 0
        %598 = vmatprep.subr.bf16.mxu0 0
        %599 = vmatpush2.bf16.msra.mxu0 0
        %600 = vmatprep.subr.bf16.mxu0 0
        %601 = vmatpush2.bf16.msra.mxu0 0
        %602 = vmatprep.subr.bf16.mxu0 0
        %603 = vmatpush2.bf16.msra.mxu0 0
        %604 = vmatprep.subr.bf16.mxu0 0
        %605 = vmatpush2.bf16.msra.mxu0 0
        %606 = vmatprep.subr.bf16.mxu0 0
        %607 = vmatpush2.bf16.msra.mxu0 0
        %608 = vmatprep.subr.bf16.mxu0 0
        %609 = vmatpush2.bf16.msra.mxu0 0
        %610 = vmatprep.mubr.bf16.mxu0 0
        %611 = vmatmul.mubr.bf16.gmra.mxu0 %v576
        %v612 = vpop.f32.mrf.mxu0
        %v613 = vadd.f32 %v563, %v612
        %v614 = vpop.f32.mrf.mxu0
        %v615 = vpop.f32.mrf.mxu0
        %v616 = vpop.f32.mrf.mxu0
        %617 = vdwg.mxu0
        %v618 = vadd.f32 %v613, %v480
        %v619 = vxor.u32 %v618, 2147483648
        %v620 = vmul.f32 %v619, 1.442695
        %v621 = vpow.pop %v620
        %v622 = vadd.f32 %v621, 1.0
        %v623 = vrcp.pop %v622
        %v624 = vmul.f32 1.0, %v623
        %v625 = vtanh.pop %v618
        %v626 = vmul.f32 %v624, %v504
        %628 = vrot.lane.b32.xlu0 %v625, 32
        %v629 = vpop.permute.xlu0 %628
        %v631 = vmul.f32 %v624, %v629
        %633 = vrot.lane.b32.xlu0 %v631, 32
        %v634 = vpop.permute.xlu0 %633
        %v636 = vadd.f32 %v626, %v634
        %v637 = vtanh.pop %v636
        %639 = vrot.lane.b32.xlu0 %v637, 32
        %v640 = vpop.permute.xlu0 %639
        %v642 = vmul.f32 %v624, %v640
        %644 = vrot.lane.b32.xlu0 %v642, 64
        %v645 = vpop.permute.xlu0 %644
        %s647 = scalar_lea.vmem %s334, 2 [#allocation12]
        %648 = vst.msk [vmem:[%s647] sm:$0x3] %vm515, %v645
        %v649 = vld [vmem:[%s294 + $0x2] sm:$0x1]
        %v650 = vld [vmem:[%s294 + $0xa] sm:$0x1]
        %v651 = vpack.c.bf16 %v649, %v649
        %v652 = vpack.c.bf16 %v650, %v650
        %v653 = vpack.c.bf16 %v642, %v642
        %655 = vrot.lane.b32.xlu0 %v653, 64
        %v656 = vpop.permute.xlu0 %655
        %v658 = vsel %vm374, %v656, 0
        %660 = vmatprep.subr.bf16.mxu0 0
        %661 = vmatpush1.bf16.msra.mxu0 0
        %662 = vmatprep.subr.bf16.mxu0 0
        %663 = vmatpush1.bf16.msra.mxu0 0
        %664 = vmatprep.subr.bf16.mxu0 0
        %665 = vmatpush1.bf16.msra.mxu0 0
        %666 = vmatprep.subr.bf16.mxu0 0
        %667 = vmatpush1.bf16.msra.mxu0 0
        %668 = vmatprep.subr.bf16.mxu0 0
        %669 = vmatpush1.bf16.msra.mxu0 0
        %670 = vmatprep.subr.bf16.mxu0 0
        %671 = vmatpush1.bf16.msra.mxu0 0
        %672 = vmatprep.subr.bf16.mxu0 0
        %673 = vmatpush1.bf16.msra.mxu0 %v371
        %674 = vmatprep.subr.bf16.mxu0 0
        %675 = vmatpush1.bf16.msra.mxu0 %v370
        %676 = vmatprep.subr.bf16.mxu0 0
        %677 = vmatpush2.bf16.msra.mxu0 0
        %678 = vmatprep.subr.bf16.mxu0 0
        %679 = vmatpush2.bf16.msra.mxu0 0
        %680 = vmatprep.subr.bf16.mxu0 0
        %681 = vmatpush2.bf16.msra.mxu0 0
        %682 = vmatprep.subr.bf16.mxu0 0
        %683 = vmatpush2.bf16.msra.mxu0 0
        %684 = vmatprep.subr.bf16.mxu0 0
        %685 = vmatpush2.bf16.msra.mxu0 0
        %686 = vmatprep.subr.bf16.mxu0 0
        %687 = vmatpush2.bf16.msra.mxu0 0
        %688 = vmatprep.subr.bf16.mxu0 0
        %689 = vmatpush2.bf16.msra.mxu0 0
        %690 = vmatprep.subr.bf16.mxu0 0
        %691 = vmatpush2.bf16.msra.mxu0 0
        %692 = vmatprep.mubr.bf16.mxu0 0
        %693 = vmatmul.mubr.bf16.gmra.mxu0 %v658
        %v694 = vpop.f32.mrf.mxu0
        %v695 = vadd.f32 0.0, %v694
        %v696 = vpop.f32.mrf.mxu0
        %v697 = vpop.f32.mrf.mxu0
        %v698 = vpop.f32.mrf.mxu0
        %699 = vdwg.mxu0
        %v702 = vunpack.c.l.b16 %v651
        %v703 = vunpack.c.l.b16 %v652
        %v704 = vrot.slane %v703, 7
        %v705 = vsel %vm423, %v704, %v702
        %v706 = vpack.c.b16 %v705, %v705
        %v708 = vsel %vm432, %v706, 0
        %710 = vmatprep.subr.bf16.mxu0 0
        %711 = vmatpush1.bf16.msra.mxu0 0
        %712 = vmatprep.subr.bf16.mxu0 0
        %713 = vmatpush1.bf16.msra.mxu0 0
        %714 = vmatprep.subr.bf16.mxu0 0
        %715 = vmatpush1.bf16.msra.mxu0 0
        %716 = vmatprep.subr.bf16.mxu0 0
        %717 = vmatpush1.bf16.msra.mxu0 0
        %718 = vmatprep.subr.bf16.mxu0 0
        %719 = vmatpush1.bf16.msra.mxu0 0
        %720 = vmatprep.subr.bf16.mxu0 0
        %721 = vmatpush1.bf16.msra.mxu0 0
        %722 = vmatprep.subr.bf16.mxu0 0
        %723 = vmatpush1.bf16.msra.mxu0 0
        %724 = vmatprep.subr.bf16.mxu0 0
        %725 = vmatpush1.bf16.msra.mxu0 %v430
        %726 = vmatprep.subr.bf16.mxu0 0
        %727 = vmatpush2.bf16.msra.mxu0 0
        %728 = vmatprep.subr.bf16.mxu0 0
        %729 = vmatpush2.bf16.msra.mxu0 0
        %730 = vmatprep.subr.bf16.mxu0 0
        %731 = vmatpush2.bf16.msra.mxu0 0
        %732 = vmatprep.subr.bf16.mxu0 0
        %733 = vmatpush2.bf16.msra.mxu0 0
        %734 = vmatprep.subr.bf16.mxu0 0
        %735 = vmatpush2.bf16.msra.mxu0 0
        %736 = vmatprep.subr.bf16.mxu0 0
        %737 = vmatpush2.bf16.msra.mxu0 0
        %738 = vmatprep.subr.bf16.mxu0 0
        %739 = vmatpush2.bf16.msra.mxu0 0
        %740 = vmatprep.subr.bf16.mxu0 0
        %741 = vmatpush2.bf16.msra.mxu0 0
        %742 = vmatprep.mubr.bf16.mxu0 0
        %743 = vmatmul.mubr.bf16.gmra.mxu0 %v708
        %v744 = vpop.f32.mrf.mxu0
        %v745 = vadd.f32 %v695, %v744
        %v746 = vpop.f32.mrf.mxu0
        %v747 = vpop.f32.mrf.mxu0
        %v748 = vpop.f32.mrf.mxu0
        %749 = vdwg.mxu0
        %v750 = vadd.f32 %v745, %v480
        %v751 = vxor.u32 %v750, 2147483648
        %v752 = vmul.f32 %v751, 1.442695
        %v753 = vpow.pop %v752
        %v754 = vadd.f32 %v753, 1.0
        %v755 = vrcp.pop %v754
        %v756 = vmul.f32 1.0, %v755
        %v757 = vtanh.pop %v750
        %v758 = vmul.f32 %v756, %v636
        %760 = vrot.lane.b32.xlu0 %v757, 32
        %v761 = vpop.permute.xlu0 %760
        %v763 = vmul.f32 %v756, %v761
        %765 = vrot.lane.b32.xlu0 %v763, 32
        %v766 = vpop.permute.xlu0 %765
        %v768 = vadd.f32 %v758, %v766
        %v769 = vtanh.pop %v768
        %771 = vrot.lane.b32.xlu0 %v769, 32
        %v772 = vpop.permute.xlu0 %771
        %v774 = vmul.f32 %v756, %v772
        %776 = vrot.lane.b32.xlu0 %v774, 64
        %v777 = vpop.permute.xlu0 %776
        %s779 = scalar_lea.vmem %s334, 4 [#allocation12]
        %780 = vst.msk [vmem:[%s779] sm:$0x3] %vm515, %v777
        %v781 = vld [vmem:[%s294 + $0x3] sm:$0x1]
        %v782 = vld [vmem:[%s294 + $0xb] sm:$0x1]
        %v783 = vpack.c.bf16 %v781, %v781
        %v784 = vpack.c.bf16 %v782, %v782
        %v785 = vpack.c.bf16 %v774, %v774
        %787 = vrot.lane.b32.xlu0 %v785, 64
        %v788 = vpop.permute.xlu0 %787
        %v790 = vsel %vm374, %v788, 0
        %792 = vmatprep.subr.bf16.mxu0 0
        %793 = vmatpush1.bf16.msra.mxu0 0
        %794 = vmatprep.subr.bf16.mxu0 0
        %795 = vmatpush1.bf16.msra.mxu0 0
        %796 = vmatprep.subr.bf16.mxu0 0
        %797 = vmatpush1.bf16.msra.mxu0 0
        %798 = vmatprep.subr.bf16.mxu0 0
        %799 = vmatpush1.bf16.msra.mxu0 0
        %800 = vmatprep.subr.bf16.mxu0 0
        %801 = vmatpush1.bf16.msra.mxu0 0
        %802 = vmatprep.subr.bf16.mxu0 0
        %803 = vmatpush1.bf16.msra.mxu0 0
        %804 = vmatprep.subr.bf16.mxu0 0
        %805 = vmatpush1.bf16.msra.mxu0 %v371
        %806 = vmatprep.subr.bf16.mxu0 0
        %807 = vmatpush1.bf16.msra.mxu0 %v370
        %808 = vmatprep.subr.bf16.mxu0 0
        %809 = vmatpush2.bf16.msra.mxu0 0
        %810 = vmatprep.subr.bf16.mxu0 0
        %811 = vmatpush2.bf16.msra.mxu0 0
        %812 = vmatprep.subr.bf16.mxu0 0
        %813 = vmatpush2.bf16.msra.mxu0 0
        %814 = vmatprep.subr.bf16.mxu0 0
        %815 = vmatpush2.bf16.msra.mxu0 0
        %816 = vmatprep.subr.bf16.mxu0 0
        %817 = vmatpush2.bf16.msra.mxu0 0
        %818 = vmatprep.subr.bf16.mxu0 0
        %819 = vmatpush2.bf16.msra.mxu0 0
        %820 = vmatprep.subr.bf16.mxu0 0
        %821 = vmatpush2.bf16.msra.mxu0 0
        %822 = vmatprep.subr.bf16.mxu0 0
        %823 = vmatpush2.bf16.msra.mxu0 0
        %824 = vmatprep.mubr.bf16.mxu0 0
        %825 = vmatmul.mubr.bf16.gmra.mxu0 %v790
        %v826 = vpop.f32.mrf.mxu0
        %v827 = vadd.f32 0.0, %v826
        %v828 = vpop.f32.mrf.mxu0
        %v829 = vpop.f32.mrf.mxu0
        %v830 = vpop.f32.mrf.mxu0
        %831 = vdwg.mxu0
        %v834 = vunpack.c.l.b16 %v783
        %v835 = vunpack.c.l.b16 %v784
        %v836 = vrot.slane %v835, 7
        %v837 = vsel %vm423, %v836, %v834
        %v838 = vpack.c.b16 %v837, %v837
        %v840 = vsel %vm432, %v838, 0
        %842 = vmatprep.subr.bf16.mxu0 0
        %843 = vmatpush1.bf16.msra.mxu0 0
        %844 = vmatprep.subr.bf16.mxu0 0
        %845 = vmatpush1.bf16.msra.mxu0 0
        %846 = vmatprep.subr.bf16.mxu0 0
        %847 = vmatpush1.bf16.msra.mxu0 0
        %848 = vmatprep.subr.bf16.mxu0 0
        %849 = vmatpush1.bf16.msra.mxu0 0
        %850 = vmatprep.subr.bf16.mxu0 0
        %851 = vmatpush1.bf16.msra.mxu0 0
        %852 = vmatprep.subr.bf16.mxu0 0
        %853 = vmatpush1.bf16.msra.mxu0 0
        %854 = vmatprep.subr.bf16.mxu0 0
        %855 = vmatpush1.bf16.msra.mxu0 0
        %856 = vmatprep.subr.bf16.mxu0 0
        %857 = vmatpush1.bf16.msra.mxu0 %v430
        %858 = vmatprep.subr.bf16.mxu0 0
        %859 = vmatpush2.bf16.msra.mxu0 0
        %860 = vmatprep.subr.bf16.mxu0 0
        %861 = vmatpush2.bf16.msra.mxu0 0
        %862 = vmatprep.subr.bf16.mxu0 0
        %863 = vmatpush2.bf16.msra.mxu0 0
        %864 = vmatprep.subr.bf16.mxu0 0
        %865 = vmatpush2.bf16.msra.mxu0 0
        %866 = vmatprep.subr.bf16.mxu0 0
        %867 = vmatpush2.bf16.msra.mxu0 0
        %868 = vmatprep.subr.bf16.mxu0 0
        %869 = vmatpush2.bf16.msra.mxu0 0
        %870 = vmatprep.subr.bf16.mxu0 0
        %871 = vmatpush2.bf16.msra.mxu0 0
        %872 = vmatprep.subr.bf16.mxu0 0
        %873 = vmatpush2.bf16.msra.mxu0 0
        %874 = vmatprep.mubr.bf16.mxu0 0
        %875 = vmatmul.mubr.bf16.gmra.mxu0 %v840
        %v876 = vpop.f32.mrf.mxu0
        %v877 = vadd.f32 %v827, %v876
        %v878 = vpop.f32.mrf.mxu0
        %v879 = vpop.f32.mrf.mxu0
        %v880 = vpop.f32.mrf.mxu0
        %881 = vdwg.mxu0
        %v882 = vadd.f32 %v877, %v480
        %v883 = vxor.u32 %v882, 2147483648
        %v884 = vmul.f32 %v883, 1.442695
        %v885 = vpow.pop %v884
        %v886 = vadd.f32 %v885, 1.0
        %v887 = vrcp.pop %v886
        %v888 = vmul.f32 1.0, %v887
        %v889 = vtanh.pop %v882
        %v890 = vmul.f32 %v888, %v768
        %892 = vrot.lane.b32.xlu0 %v889, 32
        %v893 = vpop.permute.xlu0 %892
        %v895 = vmul.f32 %v888, %v893
        %897 = vrot.lane.b32.xlu0 %v895, 32
        %v898 = vpop.permute.xlu0 %897
        %v900 = vadd.f32 %v890, %v898
        %v901 = vtanh.pop %v900
        %903 = vrot.lane.b32.xlu0 %v901, 32
        %v904 = vpop.permute.xlu0 %903
        %v906 = vmul.f32 %v888, %v904
        %908 = vrot.lane.b32.xlu0 %v906, 64
        %v909 = vpop.permute.xlu0 %908
        %s911 = scalar_lea.vmem %s334, 6 [#allocation12]
        %912 = vst.msk [vmem:[%s911] sm:$0x3] %vm515, %v909
        %v913 = vld [vmem:[%s294 + $0x4] sm:$0x1]
        %v914 = vld [vmem:[%s294 + $0xc] sm:$0x1]
        %v915 = vpack.c.bf16 %v913, %v913
        %v916 = vpack.c.bf16 %v914, %v914
        %v917 = vpack.c.bf16 %v906, %v906
        %919 = vrot.lane.b32.xlu0 %v917, 64
        %v920 = vpop.permute.xlu0 %919
        %v922 = vsel %vm374, %v920, 0
        %924 = vmatprep.subr.bf16.mxu0 0
        %925 = vmatpush1.bf16.msra.mxu0 0
        %926 = vmatprep.subr.bf16.mxu0 0
        %927 = vmatpush1.bf16.msra.mxu0 0
        %928 = vmatprep.subr.bf16.mxu0 0
        %929 = vmatpush1.bf16.msra.mxu0 0
        %930 = vmatprep.subr.bf16.mxu0 0
        %931 = vmatpush1.bf16.msra.mxu0 0
        %932 = vmatprep.subr.bf16.mxu0 0
        %933 = vmatpush1.bf16.msra.mxu0 0
        %934 = vmatprep.subr.bf16.mxu0 0
        %935 = vmatpush1.bf16.msra.mxu0 0
        %936 = vmatprep.subr.bf16.mxu0 0
        %937 = vmatpush1.bf16.msra.mxu0 %v371
        %938 = vmatprep.subr.bf16.mxu0 0
        %939 = vmatpush1.bf16.msra.mxu0 %v370
        %940 = vmatprep.subr.bf16.mxu0 0
        %941 = vmatpush2.bf16.msra.mxu0 0
        %942 = vmatprep.subr.bf16.mxu0 0
        %943 = vmatpush2.bf16.msra.mxu0 0
        %944 = vmatprep.subr.bf16.mxu0 0
        %945 = vmatpush2.bf16.msra.mxu0 0
        %946 = vmatprep.subr.bf16.mxu0 0
        %947 = vmatpush2.bf16.msra.mxu0 0
        %948 = vmatprep.subr.bf16.mxu0 0
        %949 = vmatpush2.bf16.msra.mxu0 0
        %950 = vmatprep.subr.bf16.mxu0 0
        %951 = vmatpush2.bf16.msra.mxu0 0
        %952 = vmatprep.subr.bf16.mxu0 0
        %953 = vmatpush2.bf16.msra.mxu0 0
        %954 = vmatprep.subr.bf16.mxu0 0
        %955 = vmatpush2.bf16.msra.mxu0 0
        %956 = vmatprep.mubr.bf16.mxu0 0
        %957 = vmatmul.mubr.bf16.gmra.mxu0 %v922
        %v958 = vpop.f32.mrf.mxu0
        %v959 = vadd.f32 0.0, %v958
        %v960 = vpop.f32.mrf.mxu0
        %v961 = vpop.f32.mrf.mxu0
        %v962 = vpop.f32.mrf.mxu0
        %963 = vdwg.mxu0
        %v966 = vunpack.c.l.b16 %v915
        %v967 = vunpack.c.l.b16 %v916
        %v968 = vrot.slane %v967, 7
        %v969 = vsel %vm423, %v968, %v966
        %v970 = vpack.c.b16 %v969, %v969
        %v972 = vsel %vm432, %v970, 0
        %974 = vmatprep.subr.bf16.mxu0 0
        %975 = vmatpush1.bf16.msra.mxu0 0
        %976 = vmatprep.subr.bf16.mxu0 0
        %977 = vmatpush1.bf16.msra.mxu0 0
        %978 = vmatprep.subr.bf16.mxu0 0
        %979 = vmatpush1.bf16.msra.mxu0 0
        %980 = vmatprep.subr.bf16.mxu0 0
        %981 = vmatpush1.bf16.msra.mxu0 0
        %982 = vmatprep.subr.bf16.mxu0 0
        %983 = vmatpush1.bf16.msra.mxu0 0
        %984 = vmatprep.subr.bf16.mxu0 0
        %985 = vmatpush1.bf16.msra.mxu0 0
        %986 = vmatprep.subr.bf16.mxu0 0
        %987 = vmatpush1.bf16.msra.mxu0 0
        %988 = vmatprep.subr.bf16.mxu0 0
        %989 = vmatpush1.bf16.msra.mxu0 %v430
        %990 = vmatprep.subr.bf16.mxu0 0
        %991 = vmatpush2.bf16.msra.mxu0 0
        %992 = vmatprep.subr.bf16.mxu0 0
        %993 = vmatpush2.bf16.msra.mxu0 0
        %994 = vmatprep.subr.bf16.mxu0 0
        %995 = vmatpush2.bf16.msra.mxu0 0
        %996 = vmatprep.subr.bf16.mxu0 0
        %997 = vmatpush2.bf16.msra.mxu0 0
        %998 = vmatprep.subr.bf16.mxu0 0
        %999 = vmatpush2.bf16.msra.mxu0 0
        %1000 = vmatprep.subr.bf16.mxu0 0
        %1001 = vmatpush2.bf16.msra.mxu0 0
        %1002 = vmatprep.subr.bf16.mxu0 0
        %1003 = vmatpush2.bf16.msra.mxu0 0
        %1004 = vmatprep.subr.bf16.mxu0 0
        %1005 = vmatpush2.bf16.msra.mxu0 0
        %1006 = vmatprep.mubr.bf16.mxu0 0
        %1007 = vmatmul.mubr.bf16.gmra.mxu0 %v972
        %v1008 = vpop.f32.mrf.mxu0
        %v1009 = vadd.f32 %v959, %v1008
        %v1010 = vpop.f32.mrf.mxu0
        %v1011 = vpop.f32.mrf.mxu0
        %v1012 = vpop.f32.mrf.mxu0
        %1013 = vdwg.mxu0
        %v1014 = vadd.f32 %v1009, %v480
        %v1015 = vxor.u32 %v1014, 2147483648
        %v1016 = vmul.f32 %v1015, 1.442695
        %v1017 = vpow.pop %v1016
        %v1018 = vadd.f32 %v1017, 1.0
        %v1019 = vrcp.pop %v1018
        %v1020 = vmul.f32 1.0, %v1019
        %v1021 = vtanh.pop %v1014
        %v1022 = vmul.f32 %v1020, %v900
        %1024 = vrot.lane.b32.xlu0 %v1021, 32
        %v1025 = vpop.permute.xlu0 %1024
        %v1027 = vmul.f32 %v1020, %v1025
        %1029 = vrot.lane.b32.xlu0 %v1027, 32
        %v1030 = vpop.permute.xlu0 %1029
        %v1032 = vadd.f32 %v1022, %v1030
        %v1033 = vtanh.pop %v1032
        %1035 = vrot.lane.b32.xlu0 %v1033, 32
        %v1036 = vpop.permute.xlu0 %1035
        %v1038 = vmul.f32 %v1020, %v1036
        %1040 = vrot.lane.b32.xlu0 %v1038, 64
        %v1041 = vpop.permute.xlu0 %1040
        %s1043 = scalar_lea.vmem %s334, 8 [#allocation12]
        %1044 = vst.msk [vmem:[%s1043] sm:$0x3] %vm515, %v1041
        %v1045 = vld [vmem:[%s294 + $0x5] sm:$0x1]
        %v1046 = vld [vmem:[%s294 + $0xd] sm:$0x1]
        %v1047 = vpack.c.bf16 %v1045, %v1045
        %v1048 = vpack.c.bf16 %v1046, %v1046
        %v1049 = vpack.c.bf16 %v1038, %v1038
        %1051 = vrot.lane.b32.xlu0 %v1049, 64
        %v1052 = vpop.permute.xlu0 %1051
        %v1054 = vsel %vm374, %v1052, 0
        %1056 = vmatprep.subr.bf16.mxu0 0
        %1057 = vmatpush1.bf16.msra.mxu0 0
        %1058 = vmatprep.subr.bf16.mxu0 0
        %1059 = vmatpush1.bf16.msra.mxu0 0
        %1060 = vmatprep.subr.bf16.mxu0 0
        %1061 = vmatpush1.bf16.msra.mxu0 0
        %1062 = vmatprep.subr.bf16.mxu0 0
        %1063 = vmatpush1.bf16.msra.mxu0 0
        %1064 = vmatprep.subr.bf16.mxu0 0
        %1065 = vmatpush1.bf16.msra.mxu0 0
        %1066 = vmatprep.subr.bf16.mxu0 0
        %1067 = vmatpush1.bf16.msra.mxu0 0
        %1068 = vmatprep.subr.bf16.mxu0 0
        %1069 = vmatpush1.bf16.msra.mxu0 %v371
        %1070 = vmatprep.subr.bf16.mxu0 0
        %1071 = vmatpush1.bf16.msra.mxu0 %v370
        %1072 = vmatprep.subr.bf16.mxu0 0
        %1073 = vmatpush2.bf16.msra.mxu0 0
        %1074 = vmatprep.subr.bf16.mxu0 0
        %1075 = vmatpush2.bf16.msra.mxu0 0
        %1076 = vmatprep.subr.bf16.mxu0 0
        %1077 = vmatpush2.bf16.msra.mxu0 0
        %1078 = vmatprep.subr.bf16.mxu0 0
        %1079 = vmatpush2.bf16.msra.mxu0 0
        %1080 = vmatprep.subr.bf16.mxu0 0
        %1081 = vmatpush2.bf16.msra.mxu0 0
        %1082 = vmatprep.subr.bf16.mxu0 0
        %1083 = vmatpush2.bf16.msra.mxu0 0
        %1084 = vmatprep.subr.bf16.mxu0 0
        %1085 = vmatpush2.bf16.msra.mxu0 0
        %1086 = vmatprep.subr.bf16.mxu0 0
        %1087 = vmatpush2.bf16.msra.mxu0 0
        %1088 = vmatprep.mubr.bf16.mxu0 0
        %1089 = vmatmul.mubr.bf16.gmra.mxu0 %v1054
        %v1090 = vpop.f32.mrf.mxu0
        %v1091 = vadd.f32 0.0, %v1090
        %v1092 = vpop.f32.mrf.mxu0
        %v1093 = vpop.f32.mrf.mxu0
        %v1094 = vpop.f32.mrf.mxu0
        %1095 = vdwg.mxu0
        %v1098 = vunpack.c.l.b16 %v1047
        %v1099 = vunpack.c.l.b16 %v1048
        %v1100 = vrot.slane %v1099, 7
        %v1101 = vsel %vm423, %v1100, %v1098
        %v1102 = vpack.c.b16 %v1101, %v1101
        %v1104 = vsel %vm432, %v1102, 0
        %1106 = vmatprep.subr.bf16.mxu0 0
        %1107 = vmatpush1.bf16.msra.mxu0 0
        %1108 = vmatprep.subr.bf16.mxu0 0
        %1109 = vmatpush1.bf16.msra.mxu0 0
        %1110 = vmatprep.subr.bf16.mxu0 0
        %1111 = vmatpush1.bf16.msra.mxu0 0
        %1112 = vmatprep.subr.bf16.mxu0 0
        %1113 = vmatpush1.bf16.msra.mxu0 0
        %1114 = vmatprep.subr.bf16.mxu0 0
        %1115 = vmatpush1.bf16.msra.mxu0 0
        %1116 = vmatprep.subr.bf16.mxu0 0
        %1117 = vmatpush1.bf16.msra.mxu0 0
        %1118 = vmatprep.subr.bf16.mxu0 0
        %1119 = vmatpush1.bf16.msra.mxu0 0
        %1120 = vmatprep.subr.bf16.mxu0 0
        %1121 = vmatpush1.bf16.msra.mxu0 %v430
        %1122 = vmatprep.subr.bf16.mxu0 0
        %1123 = vmatpush2.bf16.msra.mxu0 0
        %1124 = vmatprep.subr.bf16.mxu0 0
        %1125 = vmatpush2.bf16.msra.mxu0 0
        %1126 = vmatprep.subr.bf16.mxu0 0
        %1127 = vmatpush2.bf16.msra.mxu0 0
        %1128 = vmatprep.subr.bf16.mxu0 0
        %1129 = vmatpush2.bf16.msra.mxu0 0
        %1130 = vmatprep.subr.bf16.mxu0 0
        %1131 = vmatpush2.bf16.msra.mxu0 0
        %1132 = vmatprep.subr.bf16.mxu0 0
        %1133 = vmatpush2.bf16.msra.mxu0 0
        %1134 = vmatprep.subr.bf16.mxu0 0
        %1135 = vmatpush2.bf16.msra.mxu0 0
        %1136 = vmatprep.subr.bf16.mxu0 0
        %1137 = vmatpush2.bf16.msra.mxu0 0
        %1138 = vmatprep.mubr.bf16.mxu0 0
        %1139 = vmatmul.mubr.bf16.gmra.mxu0 %v1104
        %v1140 = vpop.f32.mrf.mxu0
        %v1141 = vadd.f32 %v1091, %v1140
        %v1142 = vpop.f32.mrf.mxu0
        %v1143 = vpop.f32.mrf.mxu0
        %v1144 = vpop.f32.mrf.mxu0
        %1145 = vdwg.mxu0
        %v1146 = vadd.f32 %v1141, %v480
        %v1147 = vxor.u32 %v1146, 2147483648
        %v1148 = vmul.f32 %v1147, 1.442695
        %v1149 = vpow.pop %v1148
        %v1150 = vadd.f32 %v1149, 1.0
        %v1151 = vrcp.pop %v1150
        %v1152 = vmul.f32 1.0, %v1151
        %v1153 = vtanh.pop %v1146
        %v1154 = vmul.f32 %v1152, %v1032
        %1156 = vrot.lane.b32.xlu0 %v1153, 32
        %v1157 = vpop.permute.xlu0 %1156
        %v1159 = vmul.f32 %v1152, %v1157
        %1161 = vrot.lane.b32.xlu0 %v1159, 32
        %v1162 = vpop.permute.xlu0 %1161
        %v1164 = vadd.f32 %v1154, %v1162
        %v1165 = vtanh.pop %v1164
        %1167 = vrot.lane.b32.xlu0 %v1165, 32
        %v1168 = vpop.permute.xlu0 %1167
        %v1170 = vmul.f32 %v1152, %v1168
        %1172 = vrot.lane.b32.xlu0 %v1170, 64
        %v1173 = vpop.permute.xlu0 %1172
        %s1175 = scalar_lea.vmem %s334, 10 [#allocation12]
        %1176 = vst.msk [vmem:[%s1175] sm:$0x3] %vm515, %v1173
        %v1177 = vld [vmem:[%s294 + $0x6] sm:$0x1]
        %v1178 = vld [vmem:[%s294 + $0xe] sm:$0x1]
        %v1179 = vpack.c.bf16 %v1177, %v1177
        %v1180 = vpack.c.bf16 %v1178, %v1178
        %v1181 = vpack.c.bf16 %v1170, %v1170
        %1183 = vrot.lane.b32.xlu0 %v1181, 64
        %v1184 = vpop.permute.xlu0 %1183
        %v1186 = vsel %vm374, %v1184, 0
        %1188 = vmatprep.subr.bf16.mxu0 0
        %1189 = vmatpush1.bf16.msra.mxu0 0
        %1190 = vmatprep.subr.bf16.mxu0 0
        %1191 = vmatpush1.bf16.msra.mxu0 0
        %1192 = vmatprep.subr.bf16.mxu0 0
        %1193 = vmatpush1.bf16.msra.mxu0 0
        %1194 = vmatprep.subr.bf16.mxu0 0
        %1195 = vmatpush1.bf16.msra.mxu0 0
        %1196 = vmatprep.subr.bf16.mxu0 0
        %1197 = vmatpush1.bf16.msra.mxu0 0
        %1198 = vmatprep.subr.bf16.mxu0 0
        %1199 = vmatpush1.bf16.msra.mxu0 0
        %1200 = vmatprep.subr.bf16.mxu0 0
        %1201 = vmatpush1.bf16.msra.mxu0 %v371
        %1202 = vmatprep.subr.bf16.mxu0 0
        %1203 = vmatpush1.bf16.msra.mxu0 %v370
        %1204 = vmatprep.subr.bf16.mxu0 0
        %1205 = vmatpush2.bf16.msra.mxu0 0
        %1206 = vmatprep.subr.bf16.mxu0 0
        %1207 = vmatpush2.bf16.msra.mxu0 0
        %1208 = vmatprep.subr.bf16.mxu0 0
        %1209 = vmatpush2.bf16.msra.mxu0 0
        %1210 = vmatprep.subr.bf16.mxu0 0
        %1211 = vmatpush2.bf16.msra.mxu0 0
        %1212 = vmatprep.subr.bf16.mxu0 0
        %1213 = vmatpush2.bf16.msra.mxu0 0
        %1214 = vmatprep.subr.bf16.mxu0 0
        %1215 = vmatpush2.bf16.msra.mxu0 0
        %1216 = vmatprep.subr.bf16.mxu0 0
        %1217 = vmatpush2.bf16.msra.mxu0 0
        %1218 = vmatprep.subr.bf16.mxu0 0
        %1219 = vmatpush2.bf16.msra.mxu0 0
        %1220 = vmatprep.mubr.bf16.mxu0 0
        %1221 = vmatmul.mubr.bf16.gmra.mxu0 %v1186
        %v1222 = vpop.f32.mrf.mxu0
        %v1223 = vadd.f32 0.0, %v1222
        %v1224 = vpop.f32.mrf.mxu0
        %v1225 = vpop.f32.mrf.mxu0
        %v1226 = vpop.f32.mrf.mxu0
        %1227 = vdwg.mxu0
        %v1230 = vunpack.c.l.b16 %v1179
        %v1231 = vunpack.c.l.b16 %v1180
        %v1232 = vrot.slane %v1231, 7
        %v1233 = vsel %vm423, %v1232, %v1230
        %v1234 = vpack.c.b16 %v1233, %v1233
        %v1236 = vsel %vm432, %v1234, 0
        %1238 = vmatprep.subr.bf16.mxu0 0
        %1239 = vmatpush1.bf16.msra.mxu0 0
        %1240 = vmatprep.subr.bf16.mxu0 0
        %1241 = vmatpush1.bf16.msra.mxu0 0
        %1242 = vmatprep.subr.bf16.mxu0 0
        %1243 = vmatpush1.bf16.msra.mxu0 0
        %1244 = vmatprep.subr.bf16.mxu0 0
        %1245 = vmatpush1.bf16.msra.mxu0 0
        %1246 = vmatprep.subr.bf16.mxu0 0
        %1247 = vmatpush1.bf16.msra.mxu0 0
        %1248 = vmatprep.subr.bf16.mxu0 0
        %1249 = vmatpush1.bf16.msra.mxu0 0
        %1250 = vmatprep.subr.bf16.mxu0 0
        %1251 = vmatpush1.bf16.msra.mxu0 0
        %1252 = vmatprep.subr.bf16.mxu0 0
        %1253 = vmatpush1.bf16.msra.mxu0 %v430
        %1254 = vmatprep.subr.bf16.mxu0 0
        %1255 = vmatpush2.bf16.msra.mxu0 0
        %1256 = vmatprep.subr.bf16.mxu0 0
        %1257 = vmatpush2.bf16.msra.mxu0 0
        %1258 = vmatprep.subr.bf16.mxu0 0
        %1259 = vmatpush2.bf16.msra.mxu0 0
        %1260 = vmatprep.subr.bf16.mxu0 0
        %1261 = vmatpush2.bf16.msra.mxu0 0
        %1262 = vmatprep.subr.bf16.mxu0 0
        %1263 = vmatpush2.bf16.msra.mxu0 0
        %1264 = vmatprep.subr.bf16.mxu0 0
        %1265 = vmatpush2.bf16.msra.mxu0 0
        %1266 = vmatprep.subr.bf16.mxu0 0
        %1267 = vmatpush2.bf16.msra.mxu0 0
        %1268 = vmatprep.subr.bf16.mxu0 0
        %1269 = vmatpush2.bf16.msra.mxu0 0
        %1270 = vmatprep.mubr.bf16.mxu0 0
        %1271 = vmatmul.mubr.bf16.gmra.mxu0 %v1236
        %v1272 = vpop.f32.mrf.mxu0
        %v1273 = vadd.f32 %v1223, %v1272
        %v1274 = vpop.f32.mrf.mxu0
        %v1275 = vpop.f32.mrf.mxu0
        %v1276 = vpop.f32.mrf.mxu0
        %1277 = vdwg.mxu0
        %v1278 = vadd.f32 %v1273, %v480
        %v1279 = vxor.u32 %v1278, 2147483648
        %v1280 = vmul.f32 %v1279, 1.442695
        %v1281 = vpow.pop %v1280
        %v1282 = vadd.f32 %v1281, 1.0
        %v1283 = vrcp.pop %v1282
        %v1284 = vmul.f32 1.0, %v1283
        %v1285 = vtanh.pop %v1278
        %v1286 = vmul.f32 %v1284, %v1164
        %1288 = vrot.lane.b32.xlu0 %v1285, 32
        %v1289 = vpop.permute.xlu0 %1288
        %v1291 = vmul.f32 %v1284, %v1289
        %1293 = vrot.lane.b32.xlu0 %v1291, 32
        %v1294 = vpop.permute.xlu0 %1293
        %v1296 = vadd.f32 %v1286, %v1294
        %v1297 = vtanh.pop %v1296
        %1299 = vrot.lane.b32.xlu0 %v1297, 32
        %v1300 = vpop.permute.xlu0 %1299
        %v1302 = vmul.f32 %v1284, %v1300
        %1304 = vrot.lane.b32.xlu0 %v1302, 64
        %v1305 = vpop.permute.xlu0 %1304
        %s1307 = scalar_lea.vmem %s334, 12 [#allocation12]
        %1308 = vst.msk [vmem:[%s1307] sm:$0x3] %vm515, %v1305
        %v1309 = vld [vmem:[%s294 + $0x7] sm:$0x1]
        %v1310 = vld [vmem:[%s294 + $0xf] sm:$0x1]
        %v1311 = vpack.c.bf16 %v1309, %v1309
        %v1312 = vpack.c.bf16 %v1310, %v1310
        %v1313 = vpack.c.bf16 %v1302, %v1302
        %1315 = vrot.lane.b32.xlu0 %v1313, 64
        %v1316 = vpop.permute.xlu0 %1315
        %v1318 = vsel %vm374, %v1316, 0
        %1320 = vmatprep.subr.bf16.mxu0 0
        %1321 = vmatpush1.bf16.msra.mxu0 0
        %1322 = vmatprep.subr.bf16.mxu0 0
        %1323 = vmatpush1.bf16.msra.mxu0 0
        %1324 = vmatprep.subr.bf16.mxu0 0
        %1325 = vmatpush1.bf16.msra.mxu0 0
        %1326 = vmatprep.subr.bf16.mxu0 0
        %1327 = vmatpush1.bf16.msra.mxu0 0
        %1328 = vmatprep.subr.bf16.mxu0 0
        %1329 = vmatpush1.bf16.msra.mxu0 0
        %1330 = vmatprep.subr.bf16.mxu0 0
        %1331 = vmatpush1.bf16.msra.mxu0 0
        %1332 = vmatprep.subr.bf16.mxu0 0
        %1333 = vmatpush1.bf16.msra.mxu0 %v371
        %1334 = vmatprep.subr.bf16.mxu0 0
        %1335 = vmatpush1.bf16.msra.mxu0 %v370
        %1336 = vmatprep.subr.bf16.mxu0 0
        %1337 = vmatpush2.bf16.msra.mxu0 0
        %1338 = vmatprep.subr.bf16.mxu0 0
        %1339 = vmatpush2.bf16.msra.mxu0 0
        %1340 = vmatprep.subr.bf16.mxu0 0
        %1341 = vmatpush2.bf16.msra.mxu0 0
        %1342 = vmatprep.subr.bf16.mxu0 0
        %1343 = vmatpush2.bf16.msra.mxu0 0
        %1344 = vmatprep.subr.bf16.mxu0 0
        %1345 = vmatpush2.bf16.msra.mxu0 0
        %1346 = vmatprep.subr.bf16.mxu0 0
        %1347 = vmatpush2.bf16.msra.mxu0 0
        %1348 = vmatprep.subr.bf16.mxu0 0
        %1349 = vmatpush2.bf16.msra.mxu0 0
        %1350 = vmatprep.subr.bf16.mxu0 0
        %1351 = vmatpush2.bf16.msra.mxu0 0
        %1352 = vmatprep.mubr.bf16.mxu0 0
        %1353 = vmatmul.mubr.bf16.gmra.mxu0 %v1318
        %v1354 = vpop.f32.mrf.mxu0
        %v1355 = vadd.f32 0.0, %v1354
        %v1356 = vpop.f32.mrf.mxu0
        %v1357 = vpop.f32.mrf.mxu0
        %v1358 = vpop.f32.mrf.mxu0
        %1359 = vdwg.mxu0
        %v1362 = vunpack.c.l.b16 %v1311
        %v1363 = vunpack.c.l.b16 %v1312
        %v1364 = vrot.slane %v1363, 7
        %v1365 = vsel %vm423, %v1364, %v1362
        %v1366 = vpack.c.b16 %v1365, %v1365
        %v1368 = vsel %vm432, %v1366, 0
        %1370 = vmatprep.subr.bf16.mxu0 0
        %1371 = vmatpush1.bf16.msra.mxu0 0
        %1372 = vmatprep.subr.bf16.mxu0 0
        %1373 = vmatpush1.bf16.msra.mxu0 0
        %1374 = vmatprep.subr.bf16.mxu0 0
        %1375 = vmatpush1.bf16.msra.mxu0 0
        %1376 = vmatprep.subr.bf16.mxu0 0
        %1377 = vmatpush1.bf16.msra.mxu0 0
        %1378 = vmatprep.subr.bf16.mxu0 0
        %1379 = vmatpush1.bf16.msra.mxu0 0
        %1380 = vmatprep.subr.bf16.mxu0 0
        %1381 = vmatpush1.bf16.msra.mxu0 0
        %1382 = vmatprep.subr.bf16.mxu0 0
        %1383 = vmatpush1.bf16.msra.mxu0 0
        %1384 = vmatprep.subr.bf16.mxu0 0
        %1385 = vmatpush1.bf16.msra.mxu0 %v430
        %1386 = vmatprep.subr.bf16.mxu0 0
        %1387 = vmatpush2.bf16.msra.mxu0 0
        %1388 = vmatprep.subr.bf16.mxu0 0
        %1389 = vmatpush2.bf16.msra.mxu0 0
        %1390 = vmatprep.subr.bf16.mxu0 0
        %1391 = vmatpush2.bf16.msra.mxu0 0
        %1392 = vmatprep.subr.bf16.mxu0 0
        %1393 = vmatpush2.bf16.msra.mxu0 0
        %1394 = vmatprep.subr.bf16.mxu0 0
        %1395 = vmatpush2.bf16.msra.mxu0 0
        %1396 = vmatprep.subr.bf16.mxu0 0
        %1397 = vmatpush2.bf16.msra.mxu0 0
        %1398 = vmatprep.subr.bf16.mxu0 0
        %1399 = vmatpush2.bf16.msra.mxu0 0
        %1400 = vmatprep.subr.bf16.mxu0 0
        %1401 = vmatpush2.bf16.msra.mxu0 0
        %1402 = vmatprep.mubr.bf16.mxu0 0
        %1403 = vmatmul.mubr.bf16.gmra.mxu0 %v1368
        %v1404 = vpop.f32.mrf.mxu0
        %v1405 = vadd.f32 %v1355, %v1404
        %v1406 = vpop.f32.mrf.mxu0
        %v1407 = vpop.f32.mrf.mxu0
        %v1408 = vpop.f32.mrf.mxu0
        %1409 = vdwg.mxu0
        %v1410 = vadd.f32 %v1405, %v480
        %v1411 = vxor.u32 %v1410, 2147483648
        %v1412 = vmul.f32 %v1411, 1.442695
        %v1413 = vpow.pop %v1412
        %v1414 = vadd.f32 %v1413, 1.0
        %v1415 = vrcp.pop %v1414
        %v1416 = vmul.f32 1.0, %v1415
        %v1417 = vtanh.pop %v1410
        %v1418 = vmul.f32 %v1416, %v1296
        %1420 = vrot.lane.b32.xlu0 %v1417, 32
        %v1421 = vpop.permute.xlu0 %1420
        %v1423 = vmul.f32 %v1416, %v1421
        %1425 = vrot.lane.b32.xlu0 %v1423, 32
        %v1426 = vpop.permute.xlu0 %1425
        %v1428 = vadd.f32 %v1418, %v1426
        %v1429 = vtanh.pop %v1428
        %1431 = vrot.lane.b32.xlu0 %v1429, 32
        %v1432 = vpop.permute.xlu0 %1431
        %v1434 = vmul.f32 %v1416, %v1432
        %1436 = vrot.lane.b32.xlu0 %v1434, 64
        %v1437 = vpop.permute.xlu0 %1436
        %s1439 = scalar_lea.vmem %s334, 14 [#allocation12]
        %1440 = vst.msk [vmem:[%s1439] sm:$0x3] %vm515, %v1437
        %1441 = vst.msk [vmem:[#allocation2] sm:$0x3] %vm515, %v1437
        %1443 = vrot.lane.b32.xlu0 %v1428, 96
        %v1444 = vpop.permute.xlu0 %1443
        %1446 = vst.msk [vmem:[#allocation3] sm:$0x3] %vm515, %v1444
        %1447 = vst.msk [vmem:[#allocation13] sm:$0x3] %vm515, %v1444
        %s1448 = sand.u32 %s167, 1
        %s1449 = scalar_lea.sflag [#allocation6], %s1448
        %s1450 = sand.u32 %s167, 1
        %s1451 = smul.addr %s1450, 16
        %s1452 = scalar_lea.vmem [#allocation12], %s1451
        // Predicated region
        $region65: #{tpu_custom_call.1} parent=43 // pred_check
          %p1453 = pneg %p177
        $region66: #{tpu_custom_call.1} parent=43 // pred_check_branch
          %1455 = sbr.rel (%p1453) target = $region68
        $region67: #{tpu_custom_call.1} parent=43 // pred_region
          %s1456 = smul.u32 8, %s28
          %s1458 = ssub.s32 256, 256
          %1459 = vsyncadd %s1449, %s1458
          %s1460 = smul.addr %s1456, 32
          %s1461 = scalar_lea.hbm %s6, %s1460
          %s1462 = sshll.u32 %s1452, 4
          %s1463 = int_to_ptr.vmem [resolvable:$true] %s1462
          %1468 = dma.vmem_to_hbm [thread:$0]  %s1463, 256, %s1461, %s1449, 32, 32, 2
        $region68: #{tpu_custom_call.1} parent=43 // pred_fallthru
          _
        // Predicated region
        $region69: #{tpu_custom_call.1} parent=43 // pred_check
          %p1469 = pneg %p198
        $region70: #{tpu_custom_call.1} parent=43 // pred_check_branch
          %1471 = sbr.rel (%p1469) target = $region72
        $region71: #{tpu_custom_call.1} parent=43 // pred_region
          %s1473 = ssub.s32 32, 32
          %1474 = vsyncadd [#allocation14], %s1473
          %s1476 = sshll.u32 [#allocation13], 4
          %s1477 = int_to_ptr.vmem [resolvable:$true] %s1476
          %1479 = dma.vmem_to_hbm [thread:$0]  %s1477, 32, %s7, [#allocation14]
        $region72: #{tpu_custom_call.1} parent=43 // pred_fallthru
          _
        // Predicated region
        $region73: #{tpu_custom_call.1} parent=43 // pred_check
          %p1480 = pneg %p198
        $region74: #{tpu_custom_call.1} parent=43 // pred_check_branch
          %1482 = sbr.rel (%p1480) target = $region76
        $region75: #{tpu_custom_call.1} parent=43 // pred_region
          %1483 = dma.done [#allocation14], 32
        $region76: #{tpu_custom_call.1} parent=43 // pred_fallthru
          _
      $region44: #{tpu_custom_call.1} parent=5 // pred_fallthru
        _
      %p1484 = scmp.le.s32.totalorder 2, %s23
      // Predicated region
      $region77: #{tpu_custom_call.1} parent=5 // pred_check
        %p1485 = pneg %p1484
      $region78: #{tpu_custom_call.1} parent=5 // pred_check_branch
        %1487 = sbr.rel (%p1485) target = $region80
      $region79: #{tpu_custom_call.1} parent=5 // pred_region
        %s1488 = ssub.s32 %s23, 2
        // Predicated region
        $region81: #{tpu_custom_call.1} parent=79 // pred_check
          %p1489 = pneg %p183
        $region82: #{tpu_custom_call.1} parent=79 // pred_check_branch
          %1491 = sbr.rel (%p1489) target = $region84
        $region83: #{tpu_custom_call.1} parent=79 // pred_region
          %s1492 = sand.u32 %s168, 1
          %s1493 = scalar_lea.sflag [#allocation6], %s1492
          %s1494 = sand.u32 %s168, 1
          %s1495 = smul.addr %s1494, 16
          %s1496 = scalar_lea.vmem [#allocation12], %s1495
          %1497 = dma.done %s1493, 256
        $region84: #{tpu_custom_call.1} parent=79 // pred_fallthru
          _
      $region80: #{tpu_custom_call.1} parent=5 // pred_fallthru
        _
    $region6: #{tpu_custom_call.1} parent=1 // loop_footer
      %s27 = sadd.s32 1, %s23
    $region7: #{tpu_custom_call.1} parent=1 // loop_footer_branch
      %22 = sbr.rel target = $region3
    $region8: #{tpu_custom_call.1} parent=1 // loop_exit
      _
    %1498 = vsyncpa [#allocation5], 1
    %s1499 = scalar_lea.sflag [#allocation5], 1
    %1500 = vsyncpa %s1499, 1
    %1501 = vsyncpa [#allocation8], 1
    %1502 = vsyncpa [#allocation11], 1
    %1503 = vsyncpa [#allocation6], 1
    %s1504 = scalar_lea.sflag [#allocation6], 1
    %1505 = vsyncpa %s1504, 1
    %1506 = vsyncpa [#allocation14], 1

</llo_original>
